<compile_context>
chip_gen: v6e
topology: v6e:2x2x1
jax: 0.10.0
libtpu: 0.0.40
codegen_flags: <defaults>
</compile_context>

<pallas_src>
import functools

import numpy as np
import jax
import jax.numpy as jnp
from jax import lax
from jax.experimental import pallas as pl
from jax.experimental.pallas import tpu as pltpu


# ---------------------------------------------------------------------------
# Kernel 1: tiled pairwise-distance threshold mask (int8), MXU gram matrix.
# ---------------------------------------------------------------------------
def _dist_mask_kernel(xr_ref, xc_ref, sqr_ref, sqc_ref, out_ref, *,
                      e_valid, thresh_sq, has_pad):
    i = pl.program_id(1)          # row tile
    j = pl.program_id(2)          # col tile
    te = out_ref.shape[1]

    def _d2():
        gram = lax.dot_general(xr_ref[0], xc_ref[0], (((1,), (1,)), ((), ())),
                               preferred_element_type=jnp.float32)   # (TE, TE)
        return jnp.maximum(sqr_ref[0] + sqc_ref[0] - 2.0 * gram, 0.0)

    is_diag = j == i
    if has_pad:
        heavy = (is_diag
                 | (i == pl.num_programs(1) - 1)
                 | (j == pl.num_programs(2) - 1))
    else:
        heavy = is_diag

    @pl.when(j < i)               # strictly-lower tiles are all zero: skip matmul
    def _():
        out_ref[0] = jnp.zeros((te, te), jnp.int8)

    @pl.when((j >= i) & jnp.logical_not(heavy))
    def _():                      # interior strictly-upper tile: no mask build
        d2 = _d2()
        out_ref[0] = ((d2 > 0.0) & (d2 <= thresh_sq)).astype(jnp.int8)

    @pl.when((j >= i) & heavy)
    def _():                      # diagonal / padded boundary tiles: full mask
        d2 = _d2()
        row = i * te + lax.broadcasted_iota(jnp.int32, (te, te), 0)
        col = j * te + lax.broadcasted_iota(jnp.int32, (te, te), 1)
        # d2 > 0 reproduces the reference's "exact-zero distance -> inf ->
        # dropped" behaviour (duplicate points).
        keep = (col > row) & (d2 > 0.0) & (d2 <= thresh_sq)
        if has_pad:
            keep = keep & (row < e_valid) & (col < e_valid)
        out_ref[0] = keep.astype(jnp.int8)


def pairwise_threshold_mask(x, threshold, tile_e=512):
    b, e, d = x.shape
    e128 = pl.cdiv(e, 128) * 128
    tile_e = max(128, min(tile_e, e128))        # big tiles, multiple of 128
    nt = pl.cdiv(e, tile_e)
    e_pad = nt * tile_e
    if e_pad != e:
        x = jnp.pad(x, ((0, 0), (0, e_pad - e), (0, 0)))
    # Per-point squared norms computed ONCE (not per tile / per grid step).
    sq = jnp.sum(x * x, axis=-1, keepdims=True)          # (b, E_pad, 1)
    sq_t = jnp.reshape(sq, (b, 1, e_pad))                 # (b, 1, E_pad)

    kernel = functools.partial(_dist_mask_kernel, e_valid=e,
                               thresh_sq=float(threshold) ** 2,
                               has_pad=(e_pad != e))
    mask = pl.pallas_call(
        kernel,
        out_shape=jax.ShapeDtypeStruct((b, e_pad, e_pad), jnp.int8),
        grid=(b, nt, nt),
        in_specs=[pl.BlockSpec((1, tile_e, d), lambda bb, i, j: (bb, i, 0)),
                  pl.BlockSpec((1, tile_e, d), lambda bb, i, j: (bb, j, 0)),
                  pl.BlockSpec((1, tile_e, 1), lambda bb, i, j: (bb, i, 0)),
                  pl.BlockSpec((1, 1, tile_e), lambda bb, i, j: (bb, 0, j))],
        out_specs=pl.BlockSpec((1, tile_e, tile_e), lambda bb, i, j: (bb, i, j)),
        compiler_params=pltpu.CompilerParams(
            dimension_semantics=("parallel", "parallel", "parallel")),
    )(x, x, sq, sq_t)
    if e_pad != e:
        mask = mask[:, :e, :e]
    return mask


# ---------------------------------------------------------------------------
# Kernel 2: edge-tiled gather/subtract, one batch slab per tile (scalar
# prefetch drives the pts index_map), lane-dense (D, T) output blocks.
# ---------------------------------------------------------------------------
def _edge_tile_kernel(tile_b_ref, x_ref, y_ref, pts_ref, out_ref):
    del tile_b_ref                     # only consumed by the pts index_map
    pts = pts_ref[0]                   # (E, D) slab of this tile's batch
    xv = x_ref[0]                      # (1, T) int32 first endpoint
    yv = y_ref[0]                      # (1, T) int32 second endpoint
    e = pts.shape[0]
    t = out_ref.shape[1]
    # Transposed +/-1 selection matrix (E, T); padded columns (x == y == 0)
    # cancel to zero.
    rowe = lax.broadcasted_iota(jnp.int32, (e, t), 0)
    sel = (rowe == xv).astype(jnp.float32) - (rowe == yv).astype(jnp.float32)
    # pts^T @ sel -> (D, T): edge axis on lanes => lane-dense stores.
    out_ref[...] = lax.dot_general(pts, sel, (((0,), (0,)), ((), ())),
                                   preferred_element_type=jnp.float32)


def gather_edges(inp, b_idx, x_idx, y_idx, edge_tile=128):
    batch, e, d = inp.shape
    b_np = np.asarray(b_idx, np.int64)
    x_np = np.asarray(x_idx, np.int32)
    y_np = np.asarray(y_idx, np.int32)
    n_edges = len(b_np)

    # Group edges per batch (np.nonzero output is already batch-sorted) and
    # pad each batch's edge list to a multiple of edge_tile so no tile
    # straddles two batches.  Padded slots use x == y == 0 -> zero columns.
    counts = np.bincount(b_np, minlength=batch)
    tiles_per_batch = (counts + edge_tile - 1) // edge_tile
    n_tiles = int(tiles_per_batch.sum())
    n_pad = n_tiles * edge_tile

    x_pad = np.zeros((n_pad,), np.int32)
    y_pad = np.zeros((n_pad,), np.int32)
    tile_b = np.zeros((n_tiles,), np.int32)
    keep_cols = np.zeros((n_edges,), np.int32)   # padded column of each edge

    src, dst, tl = 0, 0, 0
    for bb in range(batch):
        c = int(counts[bb]); nt_b = int(tiles_per_batch[bb])
        if nt_b == 0:
            continue
        x_pad[dst:dst + c] = x_np[src:src + c]
        y_pad[dst:dst + c] = y_np[src:src + c]
        keep_cols[src:src + c] = dst + np.arange(c, dtype=np.int32)
        tile_b[tl:tl + nt_b] = bb
        src += c; dst += nt_b * edge_tile; tl += nt_b

    x_arr = jnp.asarray(x_pad.reshape(n_tiles, 1, edge_tile))   # lane-major
    y_arr = jnp.asarray(y_pad.reshape(n_tiles, 1, edge_tile))
    tile_b_dev = jnp.asarray(tile_b)

    # TODO(synk): for very large E on v7x (64 MiB VMEM), also raise
    # vmem_limit_bytes / single-buffer the pts block; not needed at these sizes.
    out_t = pl.pallas_call(
        _edge_tile_kernel,
        out_shape=jax.ShapeDtypeStruct((d, n_pad), jnp.float32),
        grid_spec=pltpu.PrefetchScalarGridSpec(
            num_scalar_prefetch=1,
            grid=(n_tiles,),
            in_specs=[pl.BlockSpec((1, 1, edge_tile), lambda t, tb: (t, 0, 0)),
                      pl.BlockSpec((1, 1, edge_tile), lambda t, tb: (t, 0, 0)),
                      # data-dependent batch slab: one (E, D) block per tile,
                      # reused (no re-DMA) across consecutive same-batch tiles
                      pl.BlockSpec((1, e, d), lambda t, tb: (tb[t], 0, 0))],
            out_specs=pl.BlockSpec((d, edge_tile), lambda t, tb: (0, t))),
        compiler_params=pltpu.CompilerParams(
            dimension_semantics=("parallel",)),
    )(tile_b_dev, x_arr, y_arr, inp)

    # Drop padding columns, restoring the original (batch-major) edge order.
    edge_rows = jnp.take(out_t, jnp.asarray(keep_cols), axis=1).T  # (n_edges, d)
    return edge_rows


# ---------------------------------------------------------------------------
# Module wrapper
# ---------------------------------------------------------------------------
class ProduceEdges:
    """JAX/Pallas port of the PyTorch ProduceEdges module (no parameters)."""

    def __init__(self, threshold=None):
        self.threshold = threshold

    def __call__(self, embeddings):
        emb = jnp.asarray(embeddings, jnp.float32)
        batch, e, d = emb.shape

        # Pallas kernel 1: thresholded upper-triangle adjacency mask (int8).
        mask = pairwise_threshold_mask(emb, self.threshold)

        # TODO(synk): the edge count is data-dependent (dynamic output shape),
        # so index extraction runs on host; bit-packing the mask in kernel 1
        # (8 pairs / byte) would shrink this device->host transfer another 8x.
        m = np.asarray(jax.device_get(mask))
        b_idx, x_idx, y_idx = np.nonzero(m)     # row-major, same as torch.where
        n_edges = len(b_idx)
        if n_edges == 0:
            return jnp.zeros((batch, 0, d), jnp.float32)

        # Pallas kernel 2: compact per-edge differences (n_edges, d).
        edge_rows = gather_edges(emb, b_idx, x_idx, y_idx)

        # Cheap XLA one-hot expansion to the torch layout (batch, n_edges, d):
        # for edge k only row b[k] is non-zero.
        b_dev = jnp.asarray(b_idx, jnp.int32)
        onehot = (jnp.arange(batch, dtype=jnp.int32)[:, None] == b_dev[None, :])
        return onehot.astype(jnp.float32)[:, :, None] * edge_rows[None, :, :]


# ---------------------------------------------------------------------------
# Pure-numpy reference (mirrors the PyTorch code) for a correctness check.
# ---------------------------------------------------------------------------
def _reference(inp, threshold):
    inp = np.asarray(inp, np.float32)
    batch, e, d = inp.shape
    dist = np.sqrt(((inp[:, :, None, :] - inp[:, None, :, :]) ** 2).sum(-1))
    upper = np.triu(dist)
    upper[upper == 0] = np.inf
    b, x, y = np.where(upper <= threshold)
    n = len(b)
    out = np.zeros((batch, n, d), np.float32)
    for k in range(n):
        out[b[k], k, :] = inp[b[k], x[k]] - inp[b[k], y[k]]
    return out


if __name__ == "__main__":
    key = jax.random.PRNGKey(0)
    batch, elements, dim = 2, 16, 8
    embeddings = jax.random.normal(key, (batch, elements, dim), dtype=jnp.float32)
    emb_np = np.asarray(jax.device_get(embeddings), np.float32)

    # Pick a threshold sitting in the middle of the largest gap between
    # consecutive pairwise distances, so the extracted edge set is insensitive
    # to the tiny numerical difference between the in-kernel MXU gram-matrix
    # distance and the exact numpy reference.
    dist = np.sqrt(((emb_np[:, :, None, :] - emb_np[:, None, :, :]) ** 2).sum(-1))
    iu = np.triu_indices(elements, k=1)
    vals = np.sort(np.concatenate([dist[bb][iu] for bb in range(batch)]))
    lo, hi = int(0.2 * len(vals)), int(0.8 * len(vals))
    gaps = vals[lo + 1:hi] - vals[lo:hi - 1]
    gidx = lo + int(np.argmax(gaps))
    threshold = float(0.5 * (vals[gidx] + vals[gidx + 1]))

    module = ProduceEdges(threshold=threshold)
    edges = jax.block_until_ready(module(embeddings))

    ref = _reference(emb_np, threshold)
    assert edges.shape == ref.shape, (edges.shape, ref.shape)
    np.testing.assert_allclose(np.asarray(edges), ref, atol=1e-4, rtol=1e-4)
    print("KERNEL_OK")
</pallas_src>

<mosaic_0001>
module attributes {stable_mosaic.version = 11 : i64} {
  func.func @_dist_mask_kernel(%arg0: i32, %arg1: i32, %arg2: i32, %arg3: memref<1x128x8xf32, #tpu.memory_space<vmem>>, %arg4: memref<1x128x8xf32, #tpu.memory_space<vmem>>, %arg5: memref<1x128x1xf32, #tpu.memory_space<vmem>>, %arg6: memref<1x1x128xf32, #tpu.memory_space<vmem>>, %arg7: memref<1x128x128xi8, #tpu.memory_space<vmem>>) attributes {dimension_semantics = [#tpu.dimension_semantics<parallel>, #tpu.dimension_semantics<parallel>, #tpu.dimension_semantics<parallel>], iteration_bounds = array<i64: 2, 1, 1>, scalar_prefetch = 0 : i64, scratch_operands = 0 : i64, tpu.core_type = #tpu.core_type<tc>, window_params = [{transform_indices = @transform_0, window_bounds = array<i64: 1, 128, 8>}, {transform_indices = @transform_1, window_bounds = array<i64: 1, 128, 8>}, {transform_indices = @transform_2, window_bounds = array<i64: 1, 128, 1>}, {transform_indices = @transform_3, window_bounds = array<i64: 1, 1, 128>}, {transform_indices = @transform_4, window_bounds = array<i64: 1, 128, 128>}]} {
    %0 = arith.cmpi eq, %arg2, %arg1 : i32
    %c0_i32 = arith.constant 0 : i32
    %1 = arith.cmpi eq, %arg1, %c0_i32 : i32
    %2 = arith.ori %0, %1 : i1
    %c0_i32_0 = arith.constant 0 : i32
    %3 = arith.cmpi eq, %arg2, %c0_i32_0 : i32
    %4 = arith.ori %2, %3 : i1
    %5 = arith.cmpi slt, %arg2, %arg1 : i32
    %6 = arith.extui %5 : i1 to i32
    %c0_i32_1 = arith.constant 0 : i32
    %7 = arith.cmpi ne, %6, %c0_i32_1 : i32
    scf.if %7 {
      %c0_i8 = arith.constant 0 : i8
      %17 = vector.broadcast %c0_i8 : i8 to vector<128x128xi8>
      %c0 = arith.constant 0 : index
      %c0_4 = arith.constant 0 : index
      %c0_5 = arith.constant 0 : index
      %18 = vector.load %arg7[%c0, %c0_4, %c0_5] : memref<1x128x128xi8, #tpu.memory_space<vmem>>, vector<1x128x128xi8>
      %19 = vector.shape_cast %18 : vector<1x128x128xi8> to vector<128x128xi8>
      %20 = vector.shape_cast %17 : vector<128x128xi8> to vector<1x128x128xi8>
      tpu.vector_store %arg7[%c0, %c0_4, %c0_5], %20 {strides = array<i32>} : memref<1x128x128xi8, #tpu.memory_space<vmem>>, vector<1x128x128xi8>,
    } else {
    }
    %8 = arith.cmpi sge, %arg2, %arg1 : i32
    %true = arith.constant true
    %9 = arith.xori %4, %true : i1
    %10 = arith.andi %8, %9 : i1
    %11 = arith.extui %10 : i1 to i32
    %c0_i32_2 = arith.constant 0 : i32
    %12 = arith.cmpi ne, %11, %c0_i32_2 : i32
    scf.if %12 {
      %c0 = arith.constant 0 : index
      %c0_4 = arith.constant 0 : index
      %c0_5 = arith.constant 0 : index
      %17 = vector.load %arg3[%c0, %c0_4, %c0_5] : memref<1x128x8xf32, #tpu.memory_space<vmem>>, vector<1x128x8xf32>
      %18 = vector.shape_cast %17 : vector<1x128x8xf32> to vector<128x8xf32>
      %c0_6 = arith.constant 0 : index
      %c0_7 = arith.constant 0 : index
      %c0_8 = arith.constant 0 : index
      %19 = vector.load %arg4[%c0_6, %c0_7, %c0_8] : memref<1x128x8xf32, #tpu.memory_space<vmem>>, vector<1x128x8xf32>
      %20 = vector.shape_cast %19 : vector<1x128x8xf32> to vector<128x8xf32>
      %cst = arith.constant dense<0.000000e+00> : vector<128x128xf32>
      %21 = tpu.matmul %18, %20, %cst {dimension_numbers = #tpu.dot_dimension_numbers<[1], [1], [0], [0], [0, 0, 1, 0], [], []>} : vector<128x8xf32>, vector<128x8xf32>, vector<128x128xf32> -> vector<128x128xf32>
      %c0_9 = arith.constant 0 : index
      %c0_10 = arith.constant 0 : index
      %c0_11 = arith.constant 0 : index
      %22 = vector.load %arg5[%c0_9, %c0_10, %c0_11] : memref<1x128x1xf32, #tpu.memory_space<vmem>>, vector<1x128x1xf32>
      %23 = vector.shape_cast %22 : vector<1x128x1xf32> to vector<128x1xf32>
      %c0_12 = arith.constant 0 : index
      %c0_13 = arith.constant 0 : index
      %c0_14 = arith.constant 0 : index
      %24 = vector.load %arg6[%c0_12, %c0_13, %c0_14] : memref<1x1x128xf32, #tpu.memory_space<vmem>>, vector<1x1x128xf32>
      %25 = vector.shape_cast %24 : vector<1x1x128xf32> to vector<1x128xf32>
      %26 = vector.broadcast %23 : vector<128x1xf32> to vector<128x128xf32>
      %27 = vector.broadcast %25 : vector<1x128xf32> to vector<128x128xf32>
      %28 = arith.addf %26, %27 : vector<128x128xf32>
      %cst_15 = arith.constant 2.000000e+00 : f32
      %29 = vector.broadcast %cst_15 : f32 to vector<128x128xf32>
      %30 = arith.mulf %29, %21 : vector<128x128xf32>
      %31 = arith.subf %28, %30 : vector<128x128xf32>
      %cst_16 = arith.constant 0.000000e+00 : f32
      %32 = vector.broadcast %cst_16 : f32 to vector<128x128xf32>
      %33 = arith.maximumf %31, %32 : vector<128x128xf32>
      %cst_17 = arith.constant 0.000000e+00 : f32
      %34 = vector.broadcast %cst_17 : f32 to vector<128x128xf32>
      %35 = arith.cmpf ogt, %33, %34 : vector<128x128xf32>
      %cst_18 = arith.constant 18.6598434 : f32
      %36 = vector.broadcast %cst_18 : f32 to vector<128x128xf32>
      %37 = arith.cmpf ole, %33, %36 : vector<128x128xf32>
      %38 = arith.andi %35, %37 : vector<128x128xi1>
      %39 = arith.extui %38 : vector<128x128xi1> to vector<128x128xi8>
      %c0_19 = arith.constant 0 : index
      %c0_20 = arith.constant 0 : index
      %c0_21 = arith.constant 0 : index
      %40 = vector.load %arg7[%c0_19, %c0_20, %c0_21] : memref<1x128x128xi8, #tpu.memory_space<vmem>>, vector<1x128x128xi8>
      %41 = vector.shape_cast %40 : vector<1x128x128xi8> to vector<128x128xi8>
      %42 = vector.shape_cast %39 : vector<128x128xi8> to vector<1x128x128xi8>
      tpu.vector_store %arg7[%c0_19, %c0_20, %c0_21], %42 {strides = array<i32>} : memref<1x128x128xi8, #tpu.memory_space<vmem>>, vector<1x128x128xi8>,
    } else {
    }
    %13 = arith.cmpi sge, %arg2, %arg1 : i32
    %14 = arith.andi %13, %4 : i1
    %15 = arith.extui %14 : i1 to i32
    %c0_i32_3 = arith.constant 0 : i32
    %16 = arith.cmpi ne, %15, %c0_i32_3 : i32
    scf.if %16 {
      %c0 = arith.constant 0 : index
      %c0_4 = arith.constant 0 : index
      %c0_5 = arith.constant 0 : index
      %17 = vector.load %arg3[%c0, %c0_4, %c0_5] : memref<1x128x8xf32, #tpu.memory_space<vmem>>, vector<1x128x8xf32>
      %18 = vector.shape_cast %17 : vector<1x128x8xf32> to vector<128x8xf32>
      %c0_6 = arith.constant 0 : index
      %c0_7 = arith.constant 0 : index
      %c0_8 = arith.constant 0 : index
      %19 = vector.load %arg4[%c0_6, %c0_7, %c0_8] : memref<1x128x8xf32, #tpu.memory_space<vmem>>, vector<1x128x8xf32>
      %20 = vector.shape_cast %19 : vector<1x128x8xf32> to vector<128x8xf32>
      %cst = arith.constant dense<0.000000e+00> : vector<128x128xf32>
      %21 = tpu.matmul %18, %20, %cst {dimension_numbers = #tpu.dot_dimension_numbers<[1], [1], [0], [0], [0, 0, 1, 0], [], []>} : vector<128x8xf32>, vector<128x8xf32>, vector<128x128xf32> -> vector<128x128xf32>
      %c0_9 = arith.constant 0 : index
      %c0_10 = arith.constant 0 : index
      %c0_11 = arith.constant 0 : index
      %22 = vector.load %arg5[%c0_9, %c0_10, %c0_11] : memref<1x128x1xf32, #tpu.memory_space<vmem>>, vector<1x128x1xf32>
      %23 = vector.shape_cast %22 : vector<1x128x1xf32> to vector<128x1xf32>
      %c0_12 = arith.constant 0 : index
      %c0_13 = arith.constant 0 : index
      %c0_14 = arith.constant 0 : index
      %24 = vector.load %arg6[%c0_12, %c0_13, %c0_14] : memref<1x1x128xf32, #tpu.memory_space<vmem>>, vector<1x1x128xf32>
      %25 = vector.shape_cast %24 : vector<1x1x128xf32> to vector<1x128xf32>
      %26 = vector.broadcast %23 : vector<128x1xf32> to vector<128x128xf32>
      %27 = vector.broadcast %25 : vector<1x128xf32> to vector<128x128xf32>
      %28 = arith.addf %26, %27 : vector<128x128xf32>
      %cst_15 = arith.constant 2.000000e+00 : f32
      %29 = vector.broadcast %cst_15 : f32 to vector<128x128xf32>
      %30 = arith.mulf %29, %21 : vector<128x128xf32>
      %31 = arith.subf %28, %30 : vector<128x128xf32>
      %cst_16 = arith.constant 0.000000e+00 : f32
      %32 = vector.broadcast %cst_16 : f32 to vector<128x128xf32>
      %33 = arith.maximumf %31, %32 : vector<128x128xf32>
      %c128_i32 = arith.constant 128 : i32
      %34 = arith.muli %arg1, %c128_i32 : i32
      %35 = tpu.iota {dimensions = array<i32: 0>} : vector<128x128xi32>
      %36 = vector.broadcast %34 : i32 to vector<128x128xi32>
      %37 = arith.addi %36, %35 : vector<128x128xi32>
      %c128_i32_17 = arith.constant 128 : i32
      %38 = arith.muli %arg2, %c128_i32_17 : i32
      %39 = tpu.iota {dimensions = array<i32: 1>} : vector<128x128xi32>
      %40 = vector.broadcast %38 : i32 to vector<128x128xi32>
      %41 = arith.addi %40, %39 : vector<128x128xi32>
      %42 = arith.cmpi sgt, %41, %37 : vector<128x128xi32>
      %cst_18 = arith.constant 0.000000e+00 : f32
      %43 = vector.broadcast %cst_18 : f32 to vector<128x128xf32>
      %44 = arith.cmpf ogt, %33, %43 : vector<128x128xf32>
      %45 = arith.andi %42, %44 : vector<128x128xi1>
      %cst_19 = arith.constant 18.6598434 : f32
      %46 = vector.broadcast %cst_19 : f32 to vector<128x128xf32>
      %47 = arith.cmpf ole, %33, %46 : vector<128x128xf32>
      %48 = arith.andi %45, %47 : vector<128x128xi1>
      %c16_i32 = arith.constant 16 : i32
      %49 = vector.broadcast %c16_i32 : i32 to vector<128x128xi32>
      %50 = arith.cmpi slt, %37, %49 : vector<128x128xi32>
      %51 = arith.andi %48, %50 : vector<128x128xi1>
      %c16_i32_20 = arith.constant 16 : i32
      %52 = vector.broadcast %c16_i32_20 : i32 to vector<128x128xi32>
      %53 = arith.cmpi slt, %41, %52 : vector<128x128xi32>
      %54 = arith.andi %51, %53 : vector<128x128xi1>
      %55 = arith.extui %54 : vector<128x128xi1> to vector<128x128xi8>
      %c0_21 = arith.constant 0 : index
      %c0_22 = arith.constant 0 : index
      %c0_23 = arith.constant 0 : index
      %56 = vector.load %arg7[%c0_21, %c0_22, %c0_23] : memref<1x128x128xi8, #tpu.memory_space<vmem>>, vector<1x128x128xi8>
      %57 = vector.shape_cast %56 : vector<1x128x128xi8> to vector<128x128xi8>
      %58 = vector.shape_cast %55 : vector<128x128xi8> to vector<1x128x128xi8>
      tpu.vector_store %arg7[%c0_21, %c0_22, %c0_23], %58 {strides = array<i32>} : memref<1x128x128xi8, #tpu.memory_space<vmem>>, vector<1x128x128xi8>,
    } else {
    }
    return
  }
  func.func @transform_0(%arg0: i32, %arg1: i32, %arg2: i32) -> (i32, i32, i32) {
    %c0_i32 = arith.constant 0 : i32
    %c0_i32_0 = arith.constant 0 : i32
    return %arg0, %arg1, %c0_i32 : i32, i32, i32
  }
  func.func @transform_1(%arg0: i32, %arg1: i32, %arg2: i32) -> (i32, i32, i32) {
    %c0_i32 = arith.constant 0 : i32
    %c0_i32_0 = arith.constant 0 : i32
    return %arg0, %arg2, %c0_i32 : i32, i32, i32
  }
  func.func @transform_2(%arg0: i32, %arg1: i32, %arg2: i32) -> (i32, i32, i32) {
    %c0_i32 = arith.constant 0 : i32
    %c0_i32_0 = arith.constant 0 : i32
    return %arg0, %arg1, %c0_i32 : i32, i32, i32
  }
  func.func @transform_3(%arg0: i32, %arg1: i32, %arg2: i32) -> (i32, i32, i32) {
    %c0_i32 = arith.constant 0 : i32
    %c0_i32_0 = arith.constant 0 : i32
    return %arg0, %c0_i32, %arg2 : i32, i32, i32
  }
  func.func @transform_4(%arg0: i32, %arg1: i32, %arg2: i32) -> (i32, i32, i32) {
    %c0_i32 = arith.constant 0 : i32
    return %arg0, %arg1, %arg2 : i32, i32, i32
  }
}

</mosaic_0001>

<llo_original>
// kernel: tpu_custom_call.1
$region0: #{tpu_custom_call.1}
  #allocation0 [shape = 'u32[]', space=smem, size = 0x4, offset = 0x4, fixed_abs, tag = 'smem constant byte address 0x4 - core index']
  #allocation1 [shape = 'u32[144,128]{1,0:T(1,128)}', space=vmem, size = 0x12000, scoped, tag = 'internal scratch']
  %s0 = inlined_call_operand.vmem [shape: f32[2,128,8], index: 0, kind: input, shape index: {}]
  %s1 = inlined_call_operand.vmem [shape: f32[2,128,8], index: 1, kind: input, shape index: {}]
  %s2 = inlined_call_operand.vmem [shape: f32[2,128,1], index: 2, kind: input, shape index: {}]
  %s3 = inlined_call_operand.vmem [shape: f32[2,1,128], index: 3, kind: input, shape index: {}]
  %s4 = inlined_call_operand.hbm [shape: s8[2,128,128], index: 4, kind: output, shape index: {}]
  %s5 = sld [smem:[#allocation0]]
  $region61: #{tpu_custom_call.1} parent=0
    _
  %s7 = ssub.s32 1, %s5
  %s8 = scalar_select 0, %s7, %s5
  $region1: #{tpu_custom_call.1} parent=0
    #allocation2 [shape = 'u8[32768]{0}', space=vmem, size = 0x8000, scoped, tag = 'output window, operand 0']
    #allocation3 [shape = 's32[2]{0}', space=sflag, size = 0x8, scoped, tag = 'scoped memory for tpu_custom_call.1']
    %9 = vsyncpa [#allocation3], 0
    %s10 = scalar_lea.sflag [#allocation3], 1
    %11 = vsyncpa %s10, 0
    loop: start=0, step=1, limit=4
    $region2: #{tpu_custom_call.1} parent=1 // loop_pre_header
      _
    $region3: #{tpu_custom_call.1} parent=1 // loop_header
      %s13 = sphi 0, %s17
      %p14 = scmp.ge.s32.totalorder %s13, 4
      %s20 = sphi 0, %s39
      %s21 = sphi 0, %s35
      %s22 = sphi 0, %s31
      %s23 = sphi 0, %s20
      %s24 = sphi 0, %s21
      %s25 = sphi 0, %s22
      %s26 = sphi 0, %s23
      %s27 = sphi 0, %s24
      %s28 = sphi 0, %s25
      %s44 = sphi 0, %s46
      %s47 = sphi 0, %s44
      %s48 = sphi 0, %s47
      %s64 = sphi 0, %s48
      %s72 = sphi 0, %s74
      %s75 = sphi 0, %s72
      %s76 = sphi 0, %s75
      %s92 = sphi 0, %s76
      %s100 = sphi 0, %s102
      %s103 = sphi 0, %s100
      %s104 = sphi 0, %s103
      %s120 = sphi 0, %s104
      %s128 = sphi 0, %s130
      %s131 = sphi 0, %s128
      %s132 = sphi 0, %s131
      %s148 = sphi 0, %s132
      %s158 = sphi 0, %s160
      %s161 = sphi 0, %s158
      %s162 = sphi 0, %s161
      %s178 = sphi 0, %s162
    $region4: #{tpu_custom_call.1} parent=1 // loop_header_branch
      %16 = sbr.rel (%p14) target = $region8
    $region5: #{tpu_custom_call.1} parent=1 // loop_body
      %s18 = ssub.s32 %s13, 1
      %s19 = ssub.s32 %s13, 2
      %s29 = sadd.s32 1, %s22
      %p30 = scmp.ge.s32.totalorder %s29, 1
      %s31 = scalar_select %p30, 0, %s29
      %s32 = sadd.s32 1, %s21
      %s33 = scalar_select %p30, %s32, %s21
      %p34 = scmp.ge.s32.totalorder %s33, 1
      %s35 = scalar_select %p34, 0, %s33
      %s36 = sadd.s32 1, %s20
      %s37 = scalar_select %p34, %s36, %s20
      %p38 = scmp.ge.s32.totalorder %s37, 2
      %s39 = scalar_select %p38, 0, %s37
      %s40 = ssub.s32 %s20, %s39
      %s41 = ssub.s32 %s21, %s35
      %s42 = sor.u32 %s40, %s41
      %p43 = scmp.eq.s32.totalorder %s42, 0
      %s45 = sadd.s32 %s44, 1
      %s46 = scalar_select %p43, %s44, %s45
      %p49 = pneg %p43
      %p50 = scmp.eq.s32.totalorder %s13, 1
      %p51 = por %p49, %p50
      %p52 = scmp.ne.s32.totalorder %s44, %s47
      %p53 = scmp.eq.s32.totalorder %s13, 0
      %p54 = por %p52, %p53
      %p55 = scmp.ne.s32.totalorder %s44, %s47
      %p56 = scmp.eq.s32.totalorder %s18, 1
      %p57 = por %p55, %p56
      %p58 = scmp.ne.s32.totalorder %s47, %s48
      %p59 = scmp.eq.s32.totalorder %s18, 0
      %p60 = por %p58, %p59
      %p61 = scmp.ne.s32.totalorder %s47, %s48
      %p62 = scmp.eq.s32.totalorder %s19, 1
      %p63 = por %p61, %p62
      %p65 = scmp.ne.s32.totalorder %s48, %s64
      %p66 = scmp.eq.s32.totalorder %s19, 0
      %p67 = por %p65, %p66
      %s68 = ssub.s32 %s20, %s39
      %s69 = ssub.s32 %s22, %s31
      %s70 = sor.u32 %s68, %s69
      %p71 = scmp.eq.s32.totalorder %s70, 0
      %s73 = sadd.s32 %s72, 1
      %s74 = scalar_select %p71, %s72, %s73
      %p77 = pneg %p71
      %p78 = scmp.eq.s32.totalorder %s13, 1
      %p79 = por %p77, %p78
      %p80 = scmp.ne.s32.totalorder %s72, %s75
      %p81 = scmp.eq.s32.totalorder %s13, 0
      %p82 = por %p80, %p81
      %p83 = scmp.ne.s32.totalorder %s72, %s75
      %p84 = scmp.eq.s32.totalorder %s18, 1
      %p85 = por %p83, %p84
      %p86 = scmp.ne.s32.totalorder %s75, %s76
      %p87 = scmp.eq.s32.totalorder %s18, 0
      %p88 = por %p86, %p87
      %p89 = scmp.ne.s32.totalorder %s75, %s76
      %p90 = scmp.eq.s32.totalorder %s19, 1
      %p91 = por %p89, %p90
      %p93 = scmp.ne.s32.totalorder %s76, %s92
      %p94 = scmp.eq.s32.totalorder %s19, 0
      %p95 = por %p93, %p94
      %s96 = ssub.s32 %s20, %s39
      %s97 = ssub.s32 %s21, %s35
      %s98 = sor.u32 %s96, %s97
      %p99 = scmp.eq.s32.totalorder %s98, 0
      %s101 = sadd.s32 %s100, 1
      %s102 = scalar_select %p99, %s100, %s101
      %p105 = pneg %p99
      %p106 = scmp.eq.s32.totalorder %s13, 1
      %p107 = por %p105, %p106
      %p108 = scmp.ne.s32.totalorder %s100, %s103
      %p109 = scmp.eq.s32.totalorder %s13, 0
      %p110 = por %p108, %p109
      %p111 = scmp.ne.s32.totalorder %s100, %s103
      %p112 = scmp.eq.s32.totalorder %s18, 1
      %p113 = por %p111, %p112
      %p114 = scmp.ne.s32.totalorder %s103, %s104
      %p115 = scmp.eq.s32.totalorder %s18, 0
      %p116 = por %p114, %p115
      %p117 = scmp.ne.s32.totalorder %s103, %s104
      %p118 = scmp.eq.s32.totalorder %s19, 1
      %p119 = por %p117, %p118
      %p121 = scmp.ne.s32.totalorder %s104, %s120
      %p122 = scmp.eq.s32.totalorder %s19, 0
      %p123 = por %p121, %p122
      %s124 = ssub.s32 %s20, %s39
      %s125 = ssub.s32 %s22, %s31
      %s126 = sor.u32 %s124, %s125
      %p127 = scmp.eq.s32.totalorder %s126, 0
      %s129 = sadd.s32 %s128, 1
      %s130 = scalar_select %p127, %s128, %s129
      %p133 = pneg %p127
      %p134 = scmp.eq.s32.totalorder %s13, 1
      %p135 = por %p133, %p134
      %p136 = scmp.ne.s32.totalorder %s128, %s131
      %p137 = scmp.eq.s32.totalorder %s13, 0
      %p138 = por %p136, %p137
      %p139 = scmp.ne.s32.totalorder %s128, %s131
      %p140 = scmp.eq.s32.totalorder %s18, 1
      %p141 = por %p139, %p140
      %p142 = scmp.ne.s32.totalorder %s131, %s132
      %p143 = scmp.eq.s32.totalorder %s18, 0
      %p144 = por %p142, %p143
      %p145 = scmp.ne.s32.totalorder %s131, %s132
      %p146 = scmp.eq.s32.totalorder %s19, 1
      %p147 = por %p145, %p146
      %p149 = scmp.ne.s32.totalorder %s132, %s148
      %p150 = scmp.eq.s32.totalorder %s19, 0
      %p151 = por %p149, %p150
      %s152 = ssub.s32 %s20, %s39
      %s153 = ssub.s32 %s21, %s35
      %s154 = sor.u32 %s152, %s153
      %s155 = ssub.s32 %s22, %s31
      %s156 = sor.u32 %s154, %s155
      %p157 = scmp.eq.s32.totalorder %s156, 0
      %s159 = sadd.s32 %s158, 1
      %s160 = scalar_select %p157, %s158, %s159
      %p163 = pneg %p157
      %p164 = scmp.eq.s32.totalorder %s13, 1
      %p165 = por %p163, %p164
      %p166 = scmp.ne.s32.totalorder %s158, %s161
      %p167 = scmp.eq.s32.totalorder %s13, 0
      %p168 = por %p166, %p167
      %p169 = scmp.ne.s32.totalorder %s158, %s161
      %p170 = scmp.eq.s32.totalorder %s18, 1
      %p171 = por %p169, %p170
      %p172 = scmp.ne.s32.totalorder %s161, %s162
      %p173 = scmp.eq.s32.totalorder %s18, 0
      %p174 = por %p172, %p173
      %p175 = scmp.ne.s32.totalorder %s161, %s162
      %p176 = scmp.eq.s32.totalorder %s19, 1
      %p177 = por %p175, %p176
      %p179 = scmp.ne.s32.totalorder %s162, %s178
      %p180 = scmp.eq.s32.totalorder %s19, 0
      %p181 = por %p179, %p180
      %p182 = scmp.le.s32.totalorder 1, %s13
      %p183 = scmp.lt.s32.totalorder %s13, 3
      %p184 = pnand %p182, %p183
      %p185 = pneg %p184
      // Predicated region
      $region9: #{tpu_custom_call.1} parent=5 // pred_check
        _
      $region10: #{tpu_custom_call.1} parent=5 // pred_check_branch
        %187 = sbr.rel (%p184) target = $region12
      $region11: #{tpu_custom_call.1} parent=5 // pred_region
        %s188 = ssub.s32 %s13, 1
      $region12: #{tpu_custom_call.1} parent=5 // pred_fallthru
        _
      %p189 = scmp.lt.s32.totalorder %s13, 2
      // Predicated region
      $region13: #{tpu_custom_call.1} parent=5 // pred_check
        %p190 = pneg %p189
      $region14: #{tpu_custom_call.1} parent=5 // pred_check_branch
        %192 = sbr.rel (%p190) target = $region16
      $region15: #{tpu_custom_call.1} parent=5 // pred_region
        // Predicated region
        $region17: #{tpu_custom_call.1} parent=15 // pred_check
          %p193 = pneg %p54
        $region18: #{tpu_custom_call.1} parent=15 // pred_check_branch
          %195 = sbr.rel (%p193) target = $region20
        $region19: #{tpu_custom_call.1} parent=15 // pred_region
          %s196 = smul.u32 16, %s21
          %p197 = scmp.lt.s32.totalorder %s20, 1
          %s198 = scalar_select %p197, %s20, 1
          %p199 = scmp.lt.s32.totalorder %s196, 15
          %s200 = scalar_select %p199, %s196, 15
          %s201 = smul.addr %s198, 16
          %s202 = sadd.s32 %s200, %s201
          %s203 = smul.addr %s202, 8
          %s204 = scalar_lea.vmem %s0, %s203
          %s205 = smul.u32 16, %s21
        $region20: #{tpu_custom_call.1} parent=15 // pred_fallthru
          _
        // Predicated region
        $region21: #{tpu_custom_call.1} parent=15 // pred_check
          %p206 = pneg %p82
        $region22: #{tpu_custom_call.1} parent=15 // pred_check_branch
          %208 = sbr.rel (%p206) target = $region24
        $region23: #{tpu_custom_call.1} parent=15 // pred_region
          %s209 = smul.u32 16, %s22
          %p210 = scmp.lt.s32.totalorder %s20, 1
          %s211 = scalar_select %p210, %s20, 1
          %p212 = scmp.lt.s32.totalorder %s209, 15
          %s213 = scalar_select %p212, %s209, 15
          %s214 = smul.addr %s211, 16
          %s215 = sadd.s32 %s213, %s214
          %s216 = smul.addr %s215, 8
          %s217 = scalar_lea.vmem %s1, %s216
          %s218 = smul.u32 16, %s22
        $region24: #{tpu_custom_call.1} parent=15 // pred_fallthru
          _
        // Predicated region
        $region25: #{tpu_custom_call.1} parent=15 // pred_check
          %p219 = pneg %p110
        $region26: #{tpu_custom_call.1} parent=15 // pred_check_branch
          %221 = sbr.rel (%p219) target = $region28
        $region27: #{tpu_custom_call.1} parent=15 // pred_region
          %s222 = smul.u32 16, %s21
          %p223 = scmp.lt.s32.totalorder %s20, 1
          %s224 = scalar_select %p223, %s20, 1
          %p225 = scmp.lt.s32.totalorder %s222, 15
          %s226 = scalar_select %p225, %s222, 15
          %s227 = smul.addr %s224, 16
          %s228 = sadd.s32 %s226, %s227
          %s229 = smul.addr %s228, 8
          %s230 = scalar_lea.vmem %s2, %s229
          %s231 = smul.u32 16, %s21
        $region28: #{tpu_custom_call.1} parent=15 // pred_fallthru
          _
        // Predicated region
        $region29: #{tpu_custom_call.1} parent=15 // pred_check
          %p232 = pneg %p138
        $region30: #{tpu_custom_call.1} parent=15 // pred_check_branch
          %234 = sbr.rel (%p232) target = $region32
        $region31: #{tpu_custom_call.1} parent=15 // pred_region
          %p235 = scmp.lt.s32.totalorder %s20, 1
          %s236 = scalar_select %p235, %s20, 1
          %p237 = scmp.lt.s32.totalorder %s22, 0
          %s238 = scalar_select %p237, %s22, 0
          %s239 = sadd.s32 %s238, %s236
          %s240 = scalar_lea.vmem %s3, %s239
        $region32: #{tpu_custom_call.1} parent=15 // pred_fallthru
          _
      $region16: #{tpu_custom_call.1} parent=5 // pred_fallthru
        _
      %p241 = scmp.le.s32.totalorder 1, %s13
      %p242 = scmp.lt.s32.totalorder %s13, 3
      %p243 = pnand %p241, %p242
      %p244 = pneg %p243
      // Predicated region
      $region33: #{tpu_custom_call.1} parent=5 // pred_check
        _
      $region34: #{tpu_custom_call.1} parent=5 // pred_check_branch
        %246 = sbr.rel (%p243) target = $region36
      $region35: #{tpu_custom_call.1} parent=5 // pred_region
        %s247 = ssub.s32 %s13, 1
        %s248 = smul.u32 16, %s24
        %p249 = scmp.lt.s32.totalorder %s23, 1
        %s250 = scalar_select %p249, %s23, 1
        %p251 = scmp.lt.s32.totalorder %s248, 15
        %s252 = scalar_select %p251, %s248, 15
        %s253 = smul.addr %s250, 16
        %s254 = sadd.s32 %s252, %s253
        %s255 = smul.addr %s254, 8
        %s256 = scalar_lea.vmem %s0, %s255
        %p257 = pneg %p60
        %p258 = pneg %p57
        %s259 = smul.u32 16, %s25
        %p260 = scmp.lt.s32.totalorder %s23, 1
        %s261 = scalar_select %p260, %s23, 1
        %p262 = scmp.lt.s32.totalorder %s259, 15
        %s263 = scalar_select %p262, %s259, 15
        %s264 = smul.addr %s261, 16
        %s265 = sadd.s32 %s263, %s264
        %s266 = smul.addr %s265, 8
        %s267 = scalar_lea.vmem %s1, %s266
        %p268 = pneg %p88
        %p269 = pneg %p85
        %s270 = smul.u32 16, %s24
        %p271 = scmp.lt.s32.totalorder %s23, 1
        %s272 = scalar_select %p271, %s23, 1
        %p273 = scmp.lt.s32.totalorder %s270, 15
        %s274 = scalar_select %p273, %s270, 15
        %s275 = smul.addr %s272, 16
        %s276 = sadd.s32 %s274, %s275
        %s277 = smul.addr %s276, 8
        %s278 = scalar_lea.vmem %s2, %s277
        %p279 = pneg %p116
        %p280 = pneg %p113
        %p281 = scmp.lt.s32.totalorder %s23, 1
        %s282 = scalar_select %p281, %s23, 1
        %p283 = scmp.lt.s32.totalorder %s25, 0
        %s284 = scalar_select %p283, %s25, 0
        %s285 = sadd.s32 %s284, %s282
        %s286 = scalar_lea.vmem %s3, %s285
        %p287 = pneg %p144
        %p288 = pneg %p141
        %p289 = pneg %p174
        %p290 = pneg %p171
        %s291 = sand.u32 %s161, 1
        %s292 = scalar_lea.sflag [#allocation3], %s291
        %s293 = sand.u32 %s161, 1
        %s294 = smul.addr %s293, 32
        %s295 = scalar_lea.vmem [#allocation2], %s294
        %s296 = smul.u32 16, %s24
        %p297 = scmp.lt.s32.totalorder %s23, 1
        %s298 = scalar_select %p297, %s23, 1
        %p299 = scmp.lt.s32.totalorder %s296, 15
        %s300 = scalar_select %p299, %s296, 15
        %s301 = smul.addr %s298, 16
        %s302 = sadd.s32 %s300, %s301
        %s303 = smul.addr %s302, 8
        %s304 = scalar_lea.vmem %s0, %s303
        %s305 = smul.u32 16, %s24
        %s306 = smul.u32 16, %s25
        %p307 = scmp.lt.s32.totalorder %s23, 1
        %s308 = scalar_select %p307, %s23, 1
        %p309 = scmp.lt.s32.totalorder %s306, 15
        %s310 = scalar_select %p309, %s306, 15
        %s311 = smul.addr %s308, 16
        %s312 = sadd.s32 %s310, %s311
        %s313 = smul.addr %s312, 8
        %s314 = scalar_lea.vmem %s1, %s313
        %s315 = smul.u32 16, %s25
        %s316 = smul.u32 16, %s24
        %p317 = scmp.lt.s32.totalorder %s23, 1
        %s318 = scalar_select %p317, %s23, 1
        %p319 = scmp.lt.s32.totalorder %s316, 15
        %s320 = scalar_select %p319, %s316, 15
        %s321 = smul.addr %s318, 16
        %s322 = sadd.s32 %s320, %s321
        %s323 = smul.addr %s322, 8
        %s324 = scalar_lea.vmem %s2, %s323
        %s325 = smul.u32 16, %s24
        %p326 = scmp.lt.s32.totalorder %s23, 1
        %s327 = scalar_select %p326, %s23, 1
        %p328 = scmp.lt.s32.totalorder %s25, 0
        %s329 = scalar_select %p328, %s25, 0
        %s330 = sadd.s32 %s329, %s327
        %s331 = scalar_lea.vmem %s3, %s330
        %s332 = smul.u32 4, %s24
        %p335 = scmp.eq.s32.totalorder %s25, %s24
        %p336 = scmp.eq.s32.totalorder %s24, 0
        %p337 = por %p335, %p336
        %p338 = scmp.eq.s32.totalorder %s25, 0
        %p339 = por %p337, %p338
        %p340 = scmp.lt.s32.totalorder %s25, %s24
        // Predicated region
        $region37: #{tpu_custom_call.1} parent=35 // pred_check
          %p341 = pneg %p340
        $region38: #{tpu_custom_call.1} parent=35 // pred_check_branch
          %343 = sbr.rel (%p341) target = $region40
        $region39: #{tpu_custom_call.1} parent=35 // pred_region
          %344 = vst [vmem:[%s295] sm:$0xff] 0
          %345 = vst [vmem:[%s295 + $0x8] sm:$0xff] 0
          %346 = vst [vmem:[%s295 + $0x10] sm:$0xff] 0
          %347 = vst [vmem:[%s295 + $0x18] sm:$0xff] 0
        $region40: #{tpu_custom_call.1} parent=35 // pred_fallthru
          _
        %p348 = scmp.ge.s32.totalorder %s25, %s24
        %p349 = pneg %p339
        %p350 = pnand %p348, %p349
        %p351 = pneg %p350
        // Predicated region
        $region41: #{tpu_custom_call.1} parent=35 // pred_check
          _
        $region42: #{tpu_custom_call.1} parent=35 // pred_check_branch
          %353 = sbr.rel (%p350) target = $region44
        $region43: #{tpu_custom_call.1} parent=35 // pred_region
          %v354 = vld [vmem:[%s304] sm:$0xff]
          %v355 = vld [vmem:[%s304 + $0x8] sm:$0xff]
          %v356 = vld [vmem:[%s304 + $0x10] sm:$0xff]
          %v357 = vld [vmem:[%s304 + $0x18] sm:$0xff]
          %v358 = vld [vmem:[%s304 + $0x20] sm:$0xff]
          %v359 = vld [vmem:[%s304 + $0x28] sm:$0xff]
          %v360 = vld [vmem:[%s304 + $0x30] sm:$0xff]
          %v361 = vld [vmem:[%s304 + $0x38] sm:$0xff]
          %v362 = vld [vmem:[%s304 + $0x40] sm:$0xff]
          %v363 = vld [vmem:[%s304 + $0x48] sm:$0xff]
          %v364 = vld [vmem:[%s304 + $0x50] sm:$0xff]
          %v365 = vld [vmem:[%s304 + $0x58] sm:$0xff]
          %v366 = vld [vmem:[%s304 + $0x60] sm:$0xff]
          %v367 = vld [vmem:[%s304 + $0x68] sm:$0xff]
          %v368 = vld [vmem:[%s304 + $0x70] sm:$0xff]
          %v369 = vld [vmem:[%s304 + $0x78] sm:$0xff]
          %v370 = vld [vmem:[%s314] sm:$0xff]
          %v371 = vld [vmem:[%s314 + $0x8] sm:$0xff]
          %v372 = vld [vmem:[%s314 + $0x10] sm:$0xff]
          %v373 = vld [vmem:[%s314 + $0x18] sm:$0xff]
          %v374 = vld [vmem:[%s314 + $0x20] sm:$0xff]
          %v375 = vld [vmem:[%s314 + $0x28] sm:$0xff]
          %v376 = vld [vmem:[%s314 + $0x30] sm:$0xff]
          %v377 = vld [vmem:[%s314 + $0x38] sm:$0xff]
          %v378 = vld [vmem:[%s314 + $0x40] sm:$0xff]
          %v379 = vld [vmem:[%s314 + $0x48] sm:$0xff]
          %v380 = vld [vmem:[%s314 + $0x50] sm:$0xff]
          %v381 = vld [vmem:[%s314 + $0x58] sm:$0xff]
          %v382 = vld [vmem:[%s314 + $0x60] sm:$0xff]
          %v383 = vld [vmem:[%s314 + $0x68] sm:$0xff]
          %v384 = vld [vmem:[%s314 + $0x70] sm:$0xff]
          %v385 = vld [vmem:[%s314 + $0x78] sm:$0xff]
          %vm386 = vcmask 64512
          %v388 = vsel %vm386, %v354, 0
          %v391 = vsel %vm386, %v355, 0
          %v394 = vsel %vm386, %v356, 0
          %v397 = vsel %vm386, %v357, 0
          %v400 = vsel %vm386, %v358, 0
          %v403 = vsel %vm386, %v359, 0
          %v406 = vsel %vm386, %v360, 0
          %v409 = vsel %vm386, %v361, 0
          %v412 = vsel %vm386, %v362, 0
          %v415 = vsel %vm386, %v363, 0
          %v418 = vsel %vm386, %v364, 0
          %v421 = vsel %vm386, %v365, 0
          %v424 = vsel %vm386, %v366, 0
          %v427 = vsel %vm386, %v367, 0
          %v430 = vsel %vm386, %v368, 0
          %v433 = vsel %vm386, %v369, 0
          %v436 = vsel %vm386, %v370, 0
          %v439 = vsel %vm386, %v371, 0
          %v442 = vsel %vm386, %v372, 0
          %v445 = vsel %vm386, %v373, 0
          %v448 = vsel %vm386, %v374, 0
          %v451 = vsel %vm386, %v375, 0
          %v454 = vsel %vm386, %v376, 0
          %v457 = vsel %vm386, %v377, 0
          %v460 = vsel %vm386, %v378, 0
          %v463 = vsel %vm386, %v379, 0
          %v466 = vsel %vm386, %v380, 0
          %v469 = vsel %vm386, %v381, 0
          %v472 = vsel %vm386, %v382, 0
          %v475 = vsel %vm386, %v383, 0
          %v478 = vsel %vm386, %v384, 0
          %v481 = vsel %vm386, %v385, 0
          %483 = vmatprep.subr.mxu0 0.0
          %484 = vmatpush1.xpose.msra.mxu0 %v481
          %485 = vmatprep.subr.mxu0 0.0
          %486 = vmatpush1.xpose.msra.mxu0 %v478
          %487 = vmatprep.subr.mxu0 0.0
          %488 = vmatpush1.xpose.msra.mxu0 %v475
          %489 = vmatprep.subr.mxu0 0.0
          %490 = vmatpush1.xpose.msra.mxu0 %v472
          %491 = vmatprep.subr.mxu0 0.0
          %492 = vmatpush1.xpose.msra.mxu0 %v469
          %493 = vmatprep.subr.mxu0 0.0
          %494 = vmatpush1.xpose.msra.mxu0 %v466
          %495 = vmatprep.subr.mxu0 0.0
          %496 = vmatpush1.xpose.msra.mxu0 %v463
          %497 = vmatprep.subr.mxu0 0.0
          %498 = vmatpush1.xpose.msra.mxu0 %v460
          %499 = vmatprep.subr.mxu0 0.0
          %500 = vmatpush1.xpose.msra.mxu0 %v457
          %501 = vmatprep.subr.mxu0 0.0
          %502 = vmatpush1.xpose.msra.mxu0 %v454
          %503 = vmatprep.subr.mxu0 0.0
          %504 = vmatpush1.xpose.msra.mxu0 %v451
          %505 = vmatprep.subr.mxu0 0.0
          %506 = vmatpush1.xpose.msra.mxu0 %v448
          %507 = vmatprep.subr.mxu0 0.0
          %508 = vmatpush1.xpose.msra.mxu0 %v445
          %509 = vmatprep.subr.mxu0 0.0
          %510 = vmatpush1.xpose.msra.mxu0 %v442
          %511 = vmatprep.subr.mxu0 0.0
          %512 = vmatpush1.xpose.msra.mxu0 %v439
          %513 = vmatprep.subr.mxu0 0.0
          %514 = vmatpush1.xpose.msra.mxu0 %v436
          %515 = vmatprep.subr.mxu0 0.0
          %516 = vmatpush2.xpose.msra.mxu0 0.0
          %517 = vmatprep.subr.mxu0 0.0
          %518 = vmatpush2.xpose.msra.mxu0 0.0
          %519 = vmatprep.subr.mxu0 0.0
          %520 = vmatpush2.xpose.msra.mxu0 0.0
          %521 = vmatprep.subr.mxu0 0.0
          %522 = vmatpush2.xpose.msra.mxu0 0.0
          %523 = vmatprep.subr.mxu0 0.0
          %524 = vmatpush2.xpose.msra.mxu0 0.0
          %525 = vmatprep.subr.mxu0 0.0
          %526 = vmatpush2.xpose.msra.mxu0 0.0
          %527 = vmatprep.subr.mxu0 0.0
          %528 = vmatpush2.xpose.msra.mxu0 0.0
          %529 = vmatprep.subr.mxu0 0.0
          %530 = vmatpush2.xpose.msra.mxu0 0.0
          %531 = vmatprep.subr.mxu0 0.0
          %532 = vmatpush2.xpose.msra.mxu0 0.0
          %533 = vmatprep.subr.mxu0 0.0
          %534 = vmatpush2.xpose.msra.mxu0 0.0
          %535 = vmatprep.subr.mxu0 0.0
          %536 = vmatpush2.xpose.msra.mxu0 0.0
          %537 = vmatprep.subr.mxu0 0.0
          %538 = vmatpush2.xpose.msra.mxu0 0.0
          %539 = vmatprep.subr.mxu0 0.0
          %540 = vmatpush2.xpose.msra.mxu0 0.0
          %541 = vmatprep.subr.mxu0 0.0
          %542 = vmatpush2.xpose.msra.mxu0 0.0
          %543 = vmatprep.subr.mxu0 0.0
          %544 = vmatpush2.xpose.msra.mxu0 0.0
          %545 = vmatprep.subr.mxu0 0.0
          %546 = vmatpush2.xpose.msra.mxu0 0.0
          %547 = vmatprep.mubr.f32.mxu0 0.0
          %548 = vmatmul.mubr.f32.gmra.mxu0 %v388
          %v549 = vpop.f32.mrf.mxu0
          %v550 = vadd.f32 0.0, %v549
          %v551 = vpop.f32.mrf.mxu0
          %552 = vmatprep.mubr.f32.mxu0 0.0
          %553 = vmatmul.mubr.f32.gmra.mxu0 %v391
          %v554 = vpop.f32.mrf.mxu0
          %v555 = vadd.f32 0.0, %v554
          %v556 = vpop.f32.mrf.mxu0
          %557 = vmatprep.mubr.f32.mxu0 0.0
          %558 = vmatmul.mubr.f32.gmra.mxu0 %v394
          %v559 = vpop.f32.mrf.mxu0
          %v560 = vadd.f32 0.0, %v559
          %v561 = vpop.f32.mrf.mxu0
          %562 = vmatprep.mubr.f32.mxu0 0.0
          %563 = vmatmul.mubr.f32.gmra.mxu0 %v397
          %v564 = vpop.f32.mrf.mxu0
          %v565 = vadd.f32 0.0, %v564
          %v566 = vpop.f32.mrf.mxu0
          %567 = vmatprep.mubr.f32.mxu0 0.0
          %568 = vmatmul.mubr.f32.gmra.mxu0 %v400
          %v569 = vpop.f32.mrf.mxu0
          %v570 = vadd.f32 0.0, %v569
          %v571 = vpop.f32.mrf.mxu0
          %572 = vmatprep.mubr.f32.mxu0 0.0
          %573 = vmatmul.mubr.f32.gmra.mxu0 %v403
          %v574 = vpop.f32.mrf.mxu0
          %v575 = vadd.f32 0.0, %v574
          %v576 = vpop.f32.mrf.mxu0
          %577 = vmatprep.mubr.f32.mxu0 0.0
          %578 = vmatmul.mubr.f32.gmra.mxu0 %v406
          %v579 = vpop.f32.mrf.mxu0
          %v580 = vadd.f32 0.0, %v579
          %v581 = vpop.f32.mrf.mxu0
          %582 = vmatprep.mubr.f32.mxu0 0.0
          %583 = vmatmul.mubr.f32.gmra.mxu0 %v409
          %v584 = vpop.f32.mrf.mxu0
          %v585 = vadd.f32 0.0, %v584
          %v586 = vpop.f32.mrf.mxu0
          %587 = vmatprep.mubr.f32.mxu0 0.0
          %588 = vmatmul.mubr.f32.gmra.mxu0 %v412
          %v589 = vpop.f32.mrf.mxu0
          %v590 = vadd.f32 0.0, %v589
          %v591 = vpop.f32.mrf.mxu0
          %592 = vmatprep.mubr.f32.mxu0 0.0
          %593 = vmatmul.mubr.f32.gmra.mxu0 %v415
          %v594 = vpop.f32.mrf.mxu0
          %v595 = vadd.f32 0.0, %v594
          %v596 = vpop.f32.mrf.mxu0
          %597 = vmatprep.mubr.f32.mxu0 0.0
          %598 = vmatmul.mubr.f32.gmra.mxu0 %v418
          %v599 = vpop.f32.mrf.mxu0
          %v600 = vadd.f32 0.0, %v599
          %v601 = vpop.f32.mrf.mxu0
          %602 = vmatprep.mubr.f32.mxu0 0.0
          %603 = vmatmul.mubr.f32.gmra.mxu0 %v421
          %v604 = vpop.f32.mrf.mxu0
          %v605 = vadd.f32 0.0, %v604
          %v606 = vpop.f32.mrf.mxu0
          %607 = vmatprep.mubr.f32.mxu0 0.0
          %608 = vmatmul.mubr.f32.gmra.mxu0 %v424
          %v609 = vpop.f32.mrf.mxu0
          %v610 = vadd.f32 0.0, %v609
          %v611 = vpop.f32.mrf.mxu0
          %612 = vmatprep.mubr.f32.mxu0 0.0
          %613 = vmatmul.mubr.f32.gmra.mxu0 %v427
          %v614 = vpop.f32.mrf.mxu0
          %v615 = vadd.f32 0.0, %v614
          %v616 = vpop.f32.mrf.mxu0
          %617 = vmatprep.mubr.f32.mxu0 0.0
          %618 = vmatmul.mubr.f32.gmra.mxu0 %v430
          %v619 = vpop.f32.mrf.mxu0
          %v620 = vadd.f32 0.0, %v619
          %v621 = vpop.f32.mrf.mxu0
          %622 = vmatprep.mubr.f32.mxu0 0.0
          %623 = vmatmul.mubr.f32.gmra.mxu0 %v433
          %v624 = vpop.f32.mrf.mxu0
          %v625 = vadd.f32 0.0, %v624
          %v626 = vpop.f32.mrf.mxu0
          %627 = vdwg.mxu0
          %v628 = vld [vmem:[%s324] sm:$0xff]
          %v629 = vld [vmem:[%s324 + $0x8] sm:$0xff]
          %v630 = vld [vmem:[%s324 + $0x10] sm:$0xff]
          %v631 = vld [vmem:[%s324 + $0x18] sm:$0xff]
          %v632 = vld [vmem:[%s324 + $0x20] sm:$0xff]
          %v633 = vld [vmem:[%s324 + $0x28] sm:$0xff]
          %v634 = vld [vmem:[%s324 + $0x30] sm:$0xff]
          %v635 = vld [vmem:[%s324 + $0x38] sm:$0xff]
          %v636 = vld [vmem:[%s324 + $0x40] sm:$0xff]
          %v637 = vld [vmem:[%s324 + $0x48] sm:$0xff]
          %v638 = vld [vmem:[%s324 + $0x50] sm:$0xff]
          %v639 = vld [vmem:[%s324 + $0x58] sm:$0xff]
          %v640 = vld [vmem:[%s324 + $0x60] sm:$0xff]
          %v641 = vld [vmem:[%s324 + $0x68] sm:$0xff]
          %v642 = vld [vmem:[%s324 + $0x70] sm:$0xff]
          %v643 = vld [vmem:[%s324 + $0x78] sm:$0xff]
          %v644 = vld [vmem:[%s331] sm:$0x1]
          %646 = vset.pattern.permute.xlu0 0
          %647 = vperm.xlu0 %646, %v628
          %v648 = vpop.permute.xlu0 %647
          %651 = vset.pattern.permute.xlu0 0
          %652 = vperm.xlu0 %651, %v629
          %v653 = vpop.permute.xlu0 %652
          %656 = vset.pattern.permute.xlu0 0
          %657 = vperm.xlu0 %656, %v630
          %v658 = vpop.permute.xlu0 %657
          %661 = vset.pattern.permute.xlu0 0
          %662 = vperm.xlu0 %661, %v631
          %v663 = vpop.permute.xlu0 %662
          %666 = vset.pattern.permute.xlu0 0
          %667 = vperm.xlu0 %666, %v632
          %v668 = vpop.permute.xlu0 %667
          %671 = vset.pattern.permute.xlu0 0
          %672 = vperm.xlu0 %671, %v633
          %v673 = vpop.permute.xlu0 %672
          %676 = vset.pattern.permute.xlu0 0
          %677 = vperm.xlu0 %676, %v634
          %v678 = vpop.permute.xlu0 %677
          %681 = vset.pattern.permute.xlu0 0
          %682 = vperm.xlu0 %681, %v635
          %v683 = vpop.permute.xlu0 %682
          %686 = vset.pattern.permute.xlu0 0
          %687 = vperm.xlu0 %686, %v636
          %v688 = vpop.permute.xlu0 %687
          %691 = vset.pattern.permute.xlu0 0
          %692 = vperm.xlu0 %691, %v637
          %v693 = vpop.permute.xlu0 %692
          %696 = vset.pattern.permute.xlu0 0
          %697 = vperm.xlu0 %696, %v638
          %v698 = vpop.permute.xlu0 %697
          %701 = vset.pattern.permute.xlu0 0
          %702 = vperm.xlu0 %701, %v639
          %v703 = vpop.permute.xlu0 %702
          %706 = vset.pattern.permute.xlu0 0
          %707 = vperm.xlu0 %706, %v640
          %v708 = vpop.permute.xlu0 %707
          %711 = vset.pattern.permute.xlu0 0
          %712 = vperm.xlu0 %711, %v641
          %v713 = vpop.permute.xlu0 %712
          %716 = vset.pattern.permute.xlu0 0
          %717 = vperm.xlu0 %716, %v642
          %v718 = vpop.permute.xlu0 %717
          %721 = vset.pattern.permute.xlu0 0
          %722 = vperm.xlu0 %721, %v643
          %v723 = vpop.permute.xlu0 %722
          %v726 = vlaneseq
          %v727 = vshrl.u32 %v726, 7
          %v728 = vsub.s32 0, %v727
          %v729 = vrot.slane %v644, %v728
          %v731 = vadd.f32 %v648, %v729
          %v732 = vadd.f32 %v653, %v729
          %v733 = vadd.f32 %v658, %v729
          %v734 = vadd.f32 %v663, %v729
          %v735 = vadd.f32 %v668, %v729
          %v736 = vadd.f32 %v673, %v729
          %v737 = vadd.f32 %v678, %v729
          %v738 = vadd.f32 %v683, %v729
          %v739 = vadd.f32 %v688, %v729
          %v740 = vadd.f32 %v693, %v729
          %v741 = vadd.f32 %v698, %v729
          %v742 = vadd.f32 %v703, %v729
          %v743 = vadd.f32 %v708, %v729
          %v744 = vadd.f32 %v713, %v729
          %v745 = vadd.f32 %v718, %v729
          %v746 = vadd.f32 %v723, %v729
          %v747 = vmul.f32 %v550, 2.0
          %v748 = vmul.f32 %v555, 2.0
          %v749 = vmul.f32 %v560, 2.0
          %v750 = vmul.f32 %v565, 2.0
          %v751 = vmul.f32 %v570, 2.0
          %v752 = vmul.f32 %v575, 2.0
          %v753 = vmul.f32 %v580, 2.0
          %v754 = vmul.f32 %v585, 2.0
          %v755 = vmul.f32 %v590, 2.0
          %v756 = vmul.f32 %v595, 2.0
          %v757 = vmul.f32 %v600, 2.0
          %v758 = vmul.f32 %v605, 2.0
          %v759 = vmul.f32 %v610, 2.0
          %v760 = vmul.f32 %v615, 2.0
          %v761 = vmul.f32 %v620, 2.0
          %v762 = vmul.f32 %v625, 2.0
          %v763 = vsub.f32 %v731, %v747
          %v764 = vsub.f32 %v732, %v748
          %v765 = vsub.f32 %v733, %v749
          %v766 = vsub.f32 %v734, %v750
          %v767 = vsub.f32 %v735, %v751
          %v768 = vsub.f32 %v736, %v752
          %v769 = vsub.f32 %v737, %v753
          %v770 = vsub.f32 %v738, %v754
          %v771 = vsub.f32 %v739, %v755
          %v772 = vsub.f32 %v740, %v756
          %v773 = vsub.f32 %v741, %v757
          %v774 = vsub.f32 %v742, %v758
          %v775 = vsub.f32 %v743, %v759
          %v776 = vsub.f32 %v744, %v760
          %v777 = vsub.f32 %v745, %v761
          %v778 = vsub.f32 %v746, %v762
          %v779 = vmax.f32 %v763, 0.0
          %v780 = vmax.f32 %v764, 0.0
          %v781 = vmax.f32 %v765, 0.0
          %v782 = vmax.f32 %v766, 0.0
          %v783 = vmax.f32 %v767, 0.0
          %v784 = vmax.f32 %v768, 0.0
          %v785 = vmax.f32 %v769, 0.0
          %v786 = vmax.f32 %v770, 0.0
          %v787 = vmax.f32 %v771, 0.0
          %v788 = vmax.f32 %v772, 0.0
          %v789 = vmax.f32 %v773, 0.0
          %v790 = vmax.f32 %v774, 0.0
          %v791 = vmax.f32 %v775, 0.0
          %v792 = vmax.f32 %v776, 0.0
          %v793 = vmax.f32 %v777, 0.0
          %v794 = vmax.f32 %v778, 0.0
          %vm795 = vcmp.gt.f32.partialorder %v779, 0.0
          %vm796 = vcmp.gt.f32.partialorder %v780, 0.0
          %vm797 = vcmp.gt.f32.partialorder %v781, 0.0
          %vm798 = vcmp.gt.f32.partialorder %v782, 0.0
          %vm799 = vcmp.gt.f32.partialorder %v783, 0.0
          %vm800 = vcmp.gt.f32.partialorder %v784, 0.0
          %vm801 = vcmp.gt.f32.partialorder %v785, 0.0
          %vm802 = vcmp.gt.f32.partialorder %v786, 0.0
          %vm803 = vcmp.gt.f32.partialorder %v787, 0.0
          %vm804 = vcmp.gt.f32.partialorder %v788, 0.0
          %vm805 = vcmp.gt.f32.partialorder %v789, 0.0
          %vm806 = vcmp.gt.f32.partialorder %v790, 0.0
          %vm807 = vcmp.gt.f32.partialorder %v791, 0.0
          %vm808 = vcmp.gt.f32.partialorder %v792, 0.0
          %vm809 = vcmp.gt.f32.partialorder %v793, 0.0
          %vm810 = vcmp.gt.f32.partialorder %v794, 0.0
          %vm811 = vcmp.le.f32.partialorder %v779, 18.659843
          %vm812 = vcmp.le.f32.partialorder %v780, 18.659843
          %vm813 = vcmp.le.f32.partialorder %v781, 18.659843
          %vm814 = vcmp.le.f32.partialorder %v782, 18.659843
          %vm815 = vcmp.le.f32.partialorder %v783, 18.659843
          %vm816 = vcmp.le.f32.partialorder %v784, 18.659843
          %vm817 = vcmp.le.f32.partialorder %v785, 18.659843
          %vm818 = vcmp.le.f32.partialorder %v786, 18.659843
          %vm819 = vcmp.le.f32.partialorder %v787, 18.659843
          %vm820 = vcmp.le.f32.partialorder %v788, 18.659843
          %vm821 = vcmp.le.f32.partialorder %v789, 18.659843
          %vm822 = vcmp.le.f32.partialorder %v790, 18.659843
          %vm823 = vcmp.le.f32.partialorder %v791, 18.659843
          %vm824 = vcmp.le.f32.partialorder %v792, 18.659843
          %vm825 = vcmp.le.f32.partialorder %v793, 18.659843
          %vm826 = vcmp.le.f32.partialorder %v794, 18.659843
          %vm827 = vmand %vm795, %vm811
          %vm828 = vmand %vm796, %vm812
          %vm829 = vmand %vm797, %vm813
          %vm830 = vmand %vm798, %vm814
          %vm831 = vmand %vm799, %vm815
          %vm832 = vmand %vm800, %vm816
          %vm833 = vmand %vm801, %vm817
          %vm834 = vmand %vm802, %vm818
          %vm835 = vmand %vm803, %vm819
          %vm836 = vmand %vm804, %vm820
          %vm837 = vmand %vm805, %vm821
          %vm838 = vmand %vm806, %vm822
          %vm839 = vmand %vm807, %vm823
          %vm840 = vmand %vm808, %vm824
          %vm841 = vmand %vm809, %vm825
          %vm842 = vmand %vm810, %vm826
          %vm843 = vmpackc.low %vm828, %vm827
          %vm844 = vmpackc.low %vm830, %vm829
          %vm845 = vmpackc.even %vm844, %vm843
          %vm846 = vmpackc.low %vm832, %vm831
          %vm847 = vmpackc.low %vm834, %vm833
          %vm848 = vmpackc.even %vm847, %vm846
          %vm849 = vmpackc.low %vm836, %vm835
          %vm850 = vmpackc.low %vm838, %vm837
          %vm851 = vmpackc.even %vm850, %vm849
          %vm852 = vmpackc.low %vm840, %vm839
          %vm853 = vmpackc.low %vm842, %vm841
          %vm854 = vmpackc.even %vm853, %vm852
          %v855 = vsel %vm845, 16843009, 0
          %v856 = vsel %vm848, 16843009, 0
          %v857 = vsel %vm851, 16843009, 0
          %v858 = vsel %vm854, 16843009, 0
          %859 = vst [vmem:[%s295] sm:$0xff] %v855
          %860 = vst [vmem:[%s295 + $0x8] sm:$0xff] %v856
          %861 = vst [vmem:[%s295 + $0x10] sm:$0xff] %v857
          %862 = vst [vmem:[%s295 + $0x18] sm:$0xff] %v858
        $region44: #{tpu_custom_call.1} parent=35 // pred_fallthru
          _
        %p863 = pnand %p348, %p339
        %p864 = pneg %p863
        // Predicated region
        $region45: #{tpu_custom_call.1} parent=35 // pred_check
          _
        $region46: #{tpu_custom_call.1} parent=35 // pred_check_branch
          %866 = sbr.rel (%p863) target = $region48
        $region47: #{tpu_custom_call.1} parent=35 // pred_region
          %v867 = vld [vmem:[%s304] sm:$0xff]
          %v868 = vld [vmem:[%s304 + $0x8] sm:$0xff]
          %v869 = vld [vmem:[%s304 + $0x10] sm:$0xff]
          %v870 = vld [vmem:[%s304 + $0x18] sm:$0xff]
          %v871 = vld [vmem:[%s304 + $0x20] sm:$0xff]
          %v872 = vld [vmem:[%s304 + $0x28] sm:$0xff]
          %v873 = vld [vmem:[%s304 + $0x30] sm:$0xff]
          %v874 = vld [vmem:[%s304 + $0x38] sm:$0xff]
          %v875 = vld [vmem:[%s304 + $0x40] sm:$0xff]
          %v876 = vld [vmem:[%s304 + $0x48] sm:$0xff]
          %v877 = vld [vmem:[%s304 + $0x50] sm:$0xff]
          %v878 = vld [vmem:[%s304 + $0x58] sm:$0xff]
          %v879 = vld [vmem:[%s304 + $0x60] sm:$0xff]
          %v880 = vld [vmem:[%s304 + $0x68] sm:$0xff]
          %v881 = vld [vmem:[%s304 + $0x70] sm:$0xff]
          %v882 = vld [vmem:[%s304 + $0x78] sm:$0xff]
          %v883 = vld [vmem:[%s314] sm:$0xff]
          %v884 = vld [vmem:[%s314 + $0x8] sm:$0xff]
          %v885 = vld [vmem:[%s314 + $0x10] sm:$0xff]
          %v886 = vld [vmem:[%s314 + $0x18] sm:$0xff]
          %v887 = vld [vmem:[%s314 + $0x20] sm:$0xff]
          %v888 = vld [vmem:[%s314 + $0x28] sm:$0xff]
          %v889 = vld [vmem:[%s314 + $0x30] sm:$0xff]
          %v890 = vld [vmem:[%s314 + $0x38] sm:$0xff]
          %v891 = vld [vmem:[%s314 + $0x40] sm:$0xff]
          %v892 = vld [vmem:[%s314 + $0x48] sm:$0xff]
          %v893 = vld [vmem:[%s314 + $0x50] sm:$0xff]
          %v894 = vld [vmem:[%s314 + $0x58] sm:$0xff]
          %v895 = vld [vmem:[%s314 + $0x60] sm:$0xff]
          %v896 = vld [vmem:[%s314 + $0x68] sm:$0xff]
          %v897 = vld [vmem:[%s314 + $0x70] sm:$0xff]
          %v898 = vld [vmem:[%s314 + $0x78] sm:$0xff]
          %vm899 = vcmask 64512
          %v901 = vsel %vm899, %v867, 0
          %v904 = vsel %vm899, %v868, 0
          %v907 = vsel %vm899, %v869, 0
          %v910 = vsel %vm899, %v870, 0
          %v913 = vsel %vm899, %v871, 0
          %v916 = vsel %vm899, %v872, 0
          %v919 = vsel %vm899, %v873, 0
          %v922 = vsel %vm899, %v874, 0
          %v925 = vsel %vm899, %v875, 0
          %v928 = vsel %vm899, %v876, 0
          %v931 = vsel %vm899, %v877, 0
          %v934 = vsel %vm899, %v878, 0
          %v937 = vsel %vm899, %v879, 0
          %v940 = vsel %vm899, %v880, 0
          %v943 = vsel %vm899, %v881, 0
          %v946 = vsel %vm899, %v882, 0
          %v949 = vsel %vm899, %v883, 0
          %v952 = vsel %vm899, %v884, 0
          %v955 = vsel %vm899, %v885, 0
          %v958 = vsel %vm899, %v886, 0
          %v961 = vsel %vm899, %v887, 0
          %v964 = vsel %vm899, %v888, 0
          %v967 = vsel %vm899, %v889, 0
          %v970 = vsel %vm899, %v890, 0
          %v973 = vsel %vm899, %v891, 0
          %v976 = vsel %vm899, %v892, 0
          %v979 = vsel %vm899, %v893, 0
          %v982 = vsel %vm899, %v894, 0
          %v985 = vsel %vm899, %v895, 0
          %v988 = vsel %vm899, %v896, 0
          %v991 = vsel %vm899, %v897, 0
          %v994 = vsel %vm899, %v898, 0
          %996 = vmatprep.subr.mxu0 0.0
          %997 = vmatpush1.xpose.msra.mxu0 %v994
          %998 = vmatprep.subr.mxu0 0.0
          %999 = vmatpush1.xpose.msra.mxu0 %v991
          %1000 = vmatprep.subr.mxu0 0.0
          %1001 = vmatpush1.xpose.msra.mxu0 %v988
          %1002 = vmatprep.subr.mxu0 0.0
          %1003 = vmatpush1.xpose.msra.mxu0 %v985
          %1004 = vmatprep.subr.mxu0 0.0
          %1005 = vmatpush1.xpose.msra.mxu0 %v982
          %1006 = vmatprep.subr.mxu0 0.0
          %1007 = vmatpush1.xpose.msra.mxu0 %v979
          %1008 = vmatprep.subr.mxu0 0.0
          %1009 = vmatpush1.xpose.msra.mxu0 %v976
          %1010 = vmatprep.subr.mxu0 0.0
          %1011 = vmatpush1.xpose.msra.mxu0 %v973
          %1012 = vmatprep.subr.mxu0 0.0
          %1013 = vmatpush1.xpose.msra.mxu0 %v970
          %1014 = vmatprep.subr.mxu0 0.0
          %1015 = vmatpush1.xpose.msra.mxu0 %v967
          %1016 = vmatprep.subr.mxu0 0.0
          %1017 = vmatpush1.xpose.msra.mxu0 %v964
          %1018 = vmatprep.subr.mxu0 0.0
          %1019 = vmatpush1.xpose.msra.mxu0 %v961
          %1020 = vmatprep.subr.mxu0 0.0
          %1021 = vmatpush1.xpose.msra.mxu0 %v958
          %1022 = vmatprep.subr.mxu0 0.0
          %1023 = vmatpush1.xpose.msra.mxu0 %v955
          %1024 = vmatprep.subr.mxu0 0.0
          %1025 = vmatpush1.xpose.msra.mxu0 %v952
          %1026 = vmatprep.subr.mxu0 0.0
          %1027 = vmatpush1.xpose.msra.mxu0 %v949
          %1028 = vmatprep.subr.mxu0 0.0
          %1029 = vmatpush2.xpose.msra.mxu0 0.0
          %1030 = vmatprep.subr.mxu0 0.0
          %1031 = vmatpush2.xpose.msra.mxu0 0.0
          %1032 = vmatprep.subr.mxu0 0.0
          %1033 = vmatpush2.xpose.msra.mxu0 0.0
          %1034 = vmatprep.subr.mxu0 0.0
          %1035 = vmatpush2.xpose.msra.mxu0 0.0
          %1036 = vmatprep.subr.mxu0 0.0
          %1037 = vmatpush2.xpose.msra.mxu0 0.0
          %1038 = vmatprep.subr.mxu0 0.0
          %1039 = vmatpush2.xpose.msra.mxu0 0.0
          %1040 = vmatprep.subr.mxu0 0.0
          %1041 = vmatpush2.xpose.msra.mxu0 0.0
          %1042 = vmatprep.subr.mxu0 0.0
          %1043 = vmatpush2.xpose.msra.mxu0 0.0
          %1044 = vmatprep.subr.mxu0 0.0
          %1045 = vmatpush2.xpose.msra.mxu0 0.0
          %1046 = vmatprep.subr.mxu0 0.0
          %1047 = vmatpush2.xpose.msra.mxu0 0.0
          %1048 = vmatprep.subr.mxu0 0.0
          %1049 = vmatpush2.xpose.msra.mxu0 0.0
          %1050 = vmatprep.subr.mxu0 0.0
          %1051 = vmatpush2.xpose.msra.mxu0 0.0
          %1052 = vmatprep.subr.mxu0 0.0
          %1053 = vmatpush2.xpose.msra.mxu0 0.0
          %1054 = vmatprep.subr.mxu0 0.0
          %1055 = vmatpush2.xpose.msra.mxu0 0.0
          %1056 = vmatprep.subr.mxu0 0.0
          %1057 = vmatpush2.xpose.msra.mxu0 0.0
          %1058 = vmatprep.subr.mxu0 0.0
          %1059 = vmatpush2.xpose.msra.mxu0 0.0
          %1060 = vmatprep.mubr.f32.mxu0 0.0
          %1061 = vmatmul.mubr.f32.gmra.mxu0 %v901
          %v1062 = vpop.f32.mrf.mxu0
          %v1063 = vadd.f32 0.0, %v1062
          %v1064 = vpop.f32.mrf.mxu0
          %1065 = vmatprep.mubr.f32.mxu0 0.0
          %1066 = vmatmul.mubr.f32.gmra.mxu0 %v904
          %v1067 = vpop.f32.mrf.mxu0
          %v1068 = vadd.f32 0.0, %v1067
          %v1069 = vpop.f32.mrf.mxu0
          %1070 = vmatprep.mubr.f32.mxu0 0.0
          %1071 = vmatmul.mubr.f32.gmra.mxu0 %v907
          %v1072 = vpop.f32.mrf.mxu0
          %v1073 = vadd.f32 0.0, %v1072
          %v1074 = vpop.f32.mrf.mxu0
          %1075 = vmatprep.mubr.f32.mxu0 0.0
          %1076 = vmatmul.mubr.f32.gmra.mxu0 %v910
          %v1077 = vpop.f32.mrf.mxu0
          %v1078 = vadd.f32 0.0, %v1077
          %v1079 = vpop.f32.mrf.mxu0
          %1080 = vmatprep.mubr.f32.mxu0 0.0
          %1081 = vmatmul.mubr.f32.gmra.mxu0 %v913
          %v1082 = vpop.f32.mrf.mxu0
          %v1083 = vadd.f32 0.0, %v1082
          %v1084 = vpop.f32.mrf.mxu0
          %1085 = vmatprep.mubr.f32.mxu0 0.0
          %1086 = vmatmul.mubr.f32.gmra.mxu0 %v916
          %v1087 = vpop.f32.mrf.mxu0
          %v1088 = vadd.f32 0.0, %v1087
          %v1089 = vpop.f32.mrf.mxu0
          %1090 = vmatprep.mubr.f32.mxu0 0.0
          %1091 = vmatmul.mubr.f32.gmra.mxu0 %v919
          %v1092 = vpop.f32.mrf.mxu0
          %v1093 = vadd.f32 0.0, %v1092
          %v1094 = vpop.f32.mrf.mxu0
          %1095 = vmatprep.mubr.f32.mxu0 0.0
          %1096 = vmatmul.mubr.f32.gmra.mxu0 %v922
          %v1097 = vpop.f32.mrf.mxu0
          %v1098 = vadd.f32 0.0, %v1097
          %v1099 = vpop.f32.mrf.mxu0
          %1100 = vmatprep.mubr.f32.mxu0 0.0
          %1101 = vmatmul.mubr.f32.gmra.mxu0 %v925
          %v1102 = vpop.f32.mrf.mxu0
          %v1103 = vadd.f32 0.0, %v1102
          %v1104 = vpop.f32.mrf.mxu0
          %1105 = vmatprep.mubr.f32.mxu0 0.0
          %1106 = vmatmul.mubr.f32.gmra.mxu0 %v928
          %v1107 = vpop.f32.mrf.mxu0
          %v1108 = vadd.f32 0.0, %v1107
          %v1109 = vpop.f32.mrf.mxu0
          %1110 = vmatprep.mubr.f32.mxu0 0.0
          %1111 = vmatmul.mubr.f32.gmra.mxu0 %v931
          %v1112 = vpop.f32.mrf.mxu0
          %v1113 = vadd.f32 0.0, %v1112
          %v1114 = vpop.f32.mrf.mxu0
          %1115 = vmatprep.mubr.f32.mxu0 0.0
          %1116 = vmatmul.mubr.f32.gmra.mxu0 %v934
          %v1117 = vpop.f32.mrf.mxu0
          %v1118 = vadd.f32 0.0, %v1117
          %v1119 = vpop.f32.mrf.mxu0
          %1120 = vmatprep.mubr.f32.mxu0 0.0
          %1121 = vmatmul.mubr.f32.gmra.mxu0 %v937
          %v1122 = vpop.f32.mrf.mxu0
          %v1123 = vadd.f32 0.0, %v1122
          %v1124 = vpop.f32.mrf.mxu0
          %1125 = vmatprep.mubr.f32.mxu0 0.0
          %1126 = vmatmul.mubr.f32.gmra.mxu0 %v940
          %v1127 = vpop.f32.mrf.mxu0
          %v1128 = vadd.f32 0.0, %v1127
          %v1129 = vpop.f32.mrf.mxu0
          %1130 = vmatprep.mubr.f32.mxu0 0.0
          %1131 = vmatmul.mubr.f32.gmra.mxu0 %v943
          %v1132 = vpop.f32.mrf.mxu0
          %v1133 = vadd.f32 0.0, %v1132
          %v1134 = vpop.f32.mrf.mxu0
          %1135 = vmatprep.mubr.f32.mxu0 0.0
          %1136 = vmatmul.mubr.f32.gmra.mxu0 %v946
          %v1137 = vpop.f32.mrf.mxu0
          %v1138 = vadd.f32 0.0, %v1137
          %v1139 = vpop.f32.mrf.mxu0
          %1140 = vdwg.mxu0
          %v1141 = vld [vmem:[%s324] sm:$0xff]
          %v1142 = vld [vmem:[%s324 + $0x8] sm:$0xff]
          %v1143 = vld [vmem:[%s324 + $0x10] sm:$0xff]
          %v1144 = vld [vmem:[%s324 + $0x18] sm:$0xff]
          %v1145 = vld [vmem:[%s324 + $0x20] sm:$0xff]
          %v1146 = vld [vmem:[%s324 + $0x28] sm:$0xff]
          %v1147 = vld [vmem:[%s324 + $0x30] sm:$0xff]
          %v1148 = vld [vmem:[%s324 + $0x38] sm:$0xff]
          %v1149 = vld [vmem:[%s324 + $0x40] sm:$0xff]
          %v1150 = vld [vmem:[%s324 + $0x48] sm:$0xff]
          %v1151 = vld [vmem:[%s324 + $0x50] sm:$0xff]
          %v1152 = vld [vmem:[%s324 + $0x58] sm:$0xff]
          %v1153 = vld [vmem:[%s324 + $0x60] sm:$0xff]
          %v1154 = vld [vmem:[%s324 + $0x68] sm:$0xff]
          %v1155 = vld [vmem:[%s324 + $0x70] sm:$0xff]
          %v1156 = vld [vmem:[%s324 + $0x78] sm:$0xff]
          %v1157 = vld [vmem:[%s331] sm:$0x1]
          %1159 = vset.pattern.permute.xlu0 0
          %1160 = vperm.xlu0 %1159, %v1141
          %v1161 = vpop.permute.xlu0 %1160
          %1164 = vset.pattern.permute.xlu0 0
          %1165 = vperm.xlu0 %1164, %v1142
          %v1166 = vpop.permute.xlu0 %1165
          %1169 = vset.pattern.permute.xlu0 0
          %1170 = vperm.xlu0 %1169, %v1143
          %v1171 = vpop.permute.xlu0 %1170
          %1174 = vset.pattern.permute.xlu0 0
          %1175 = vperm.xlu0 %1174, %v1144
          %v1176 = vpop.permute.xlu0 %1175
          %1179 = vset.pattern.permute.xlu0 0
          %1180 = vperm.xlu0 %1179, %v1145
          %v1181 = vpop.permute.xlu0 %1180
          %1184 = vset.pattern.permute.xlu0 0
          %1185 = vperm.xlu0 %1184, %v1146
          %v1186 = vpop.permute.xlu0 %1185
          %1189 = vset.pattern.permute.xlu0 0
          %1190 = vperm.xlu0 %1189, %v1147
          %v1191 = vpop.permute.xlu0 %1190
          %1194 = vset.pattern.permute.xlu0 0
          %1195 = vperm.xlu0 %1194, %v1148
          %v1196 = vpop.permute.xlu0 %1195
          %1199 = vset.pattern.permute.xlu0 0
          %1200 = vperm.xlu0 %1199, %v1149
          %v1201 = vpop.permute.xlu0 %1200
          %1204 = vset.pattern.permute.xlu0 0
          %1205 = vperm.xlu0 %1204, %v1150
          %v1206 = vpop.permute.xlu0 %1205
          %1209 = vset.pattern.permute.xlu0 0
          %1210 = vperm.xlu0 %1209, %v1151
          %v1211 = vpop.permute.xlu0 %1210
          %1214 = vset.pattern.permute.xlu0 0
          %1215 = vperm.xlu0 %1214, %v1152
          %v1216 = vpop.permute.xlu0 %1215
          %1219 = vset.pattern.permute.xlu0 0
          %1220 = vperm.xlu0 %1219, %v1153
          %v1221 = vpop.permute.xlu0 %1220
          %1224 = vset.pattern.permute.xlu0 0
          %1225 = vperm.xlu0 %1224, %v1154
          %v1226 = vpop.permute.xlu0 %1225
          %1229 = vset.pattern.permute.xlu0 0
          %1230 = vperm.xlu0 %1229, %v1155
          %v1231 = vpop.permute.xlu0 %1230
          %1234 = vset.pattern.permute.xlu0 0
          %1235 = vperm.xlu0 %1234, %v1156
          %v1236 = vpop.permute.xlu0 %1235
          %v1239 = vlaneseq
          %v1240 = vshrl.u32 %v1239, 7
          %v1241 = vsub.s32 0, %v1240
          %v1242 = vrot.slane %v1157, %v1241
          %v1244 = vadd.f32 %v1161, %v1242
          %v1245 = vadd.f32 %v1166, %v1242
          %v1246 = vadd.f32 %v1171, %v1242
          %v1247 = vadd.f32 %v1176, %v1242
          %v1248 = vadd.f32 %v1181, %v1242
          %v1249 = vadd.f32 %v1186, %v1242
          %v1250 = vadd.f32 %v1191, %v1242
          %v1251 = vadd.f32 %v1196, %v1242
          %v1252 = vadd.f32 %v1201, %v1242
          %v1253 = vadd.f32 %v1206, %v1242
          %v1254 = vadd.f32 %v1211, %v1242
          %v1255 = vadd.f32 %v1216, %v1242
          %v1256 = vadd.f32 %v1221, %v1242
          %v1257 = vadd.f32 %v1226, %v1242
          %v1258 = vadd.f32 %v1231, %v1242
          %v1259 = vadd.f32 %v1236, %v1242
          %v1260 = vmul.f32 %v1063, 2.0
          %v1261 = vmul.f32 %v1068, 2.0
          %v1262 = vmul.f32 %v1073, 2.0
          %v1263 = vmul.f32 %v1078, 2.0
          %v1264 = vmul.f32 %v1083, 2.0
          %v1265 = vmul.f32 %v1088, 2.0
          %v1266 = vmul.f32 %v1093, 2.0
          %v1267 = vmul.f32 %v1098, 2.0
          %v1268 = vmul.f32 %v1103, 2.0
          %v1269 = vmul.f32 %v1108, 2.0
          %v1270 = vmul.f32 %v1113, 2.0
          %v1271 = vmul.f32 %v1118, 2.0
          %v1272 = vmul.f32 %v1123, 2.0
          %v1273 = vmul.f32 %v1128, 2.0
          %v1274 = vmul.f32 %v1133, 2.0
          %v1275 = vmul.f32 %v1138, 2.0
          %v1276 = vsub.f32 %v1244, %v1260
          %v1277 = vsub.f32 %v1245, %v1261
          %v1278 = vsub.f32 %v1246, %v1262
          %v1279 = vsub.f32 %v1247, %v1263
          %v1280 = vsub.f32 %v1248, %v1264
          %v1281 = vsub.f32 %v1249, %v1265
          %v1282 = vsub.f32 %v1250, %v1266
          %v1283 = vsub.f32 %v1251, %v1267
          %v1284 = vsub.f32 %v1252, %v1268
          %v1285 = vsub.f32 %v1253, %v1269
          %v1286 = vsub.f32 %v1254, %v1270
          %v1287 = vsub.f32 %v1255, %v1271
          %v1288 = vsub.f32 %v1256, %v1272
          %v1289 = vsub.f32 %v1257, %v1273
          %v1290 = vsub.f32 %v1258, %v1274
          %v1291 = vsub.f32 %v1259, %v1275
          %v1292 = vmax.f32 %v1276, 0.0
          %v1293 = vmax.f32 %v1277, 0.0
          %v1294 = vmax.f32 %v1278, 0.0
          %v1295 = vmax.f32 %v1279, 0.0
          %v1296 = vmax.f32 %v1280, 0.0
          %v1297 = vmax.f32 %v1281, 0.0
          %v1298 = vmax.f32 %v1282, 0.0
          %v1299 = vmax.f32 %v1283, 0.0
          %v1300 = vmax.f32 %v1284, 0.0
          %v1301 = vmax.f32 %v1285, 0.0
          %v1302 = vmax.f32 %v1286, 0.0
          %v1303 = vmax.f32 %v1287, 0.0
          %v1304 = vmax.f32 %v1288, 0.0
          %v1305 = vmax.f32 %v1289, 0.0
          %v1306 = vmax.f32 %v1290, 0.0
          %v1307 = vmax.f32 %v1291, 0.0
          %s1308 = smul.u32 %s24, 128
          %v1309 = vlaneseq
          %v1310 = vshrl.u32 %v1309, 7
          %v1311 = vadd.s32 %v1310, 8
          %v1312 = vadd.s32 %v1310, 16
          %v1313 = vadd.s32 %v1310, 24
          %v1314 = vadd.s32 %v1310, 32
          %v1315 = vadd.s32 %v1310, 40
          %v1316 = vadd.s32 %v1310, 48
          %v1317 = vadd.s32 %v1310, 56
          %v1318 = vadd.s32 %v1310, 64
          %v1319 = vadd.s32 %v1310, 72
          %v1320 = vadd.s32 %v1310, 80
          %v1321 = vadd.s32 %v1310, 88
          %v1322 = vadd.s32 %v1310, 96
          %v1323 = vadd.s32 %v1310, 104
          %v1324 = vadd.s32 %v1310, 112
          %v1325 = vadd.s32 %v1310, 120
          %v1326 = vstv %s1308
          %v1327 = vadd.s32 %v1326, %v1310
          %v1328 = vadd.s32 %v1326, %v1311
          %v1329 = vadd.s32 %v1326, %v1312
          %v1330 = vadd.s32 %v1326, %v1313
          %v1331 = vadd.s32 %v1326, %v1314
          %v1332 = vadd.s32 %v1326, %v1315
          %v1333 = vadd.s32 %v1326, %v1316
          %v1334 = vadd.s32 %v1326, %v1317
          %v1335 = vadd.s32 %v1326, %v1318
          %v1336 = vadd.s32 %v1326, %v1319
          %v1337 = vadd.s32 %v1326, %v1320
          %v1338 = vadd.s32 %v1326, %v1321
          %v1339 = vadd.s32 %v1326, %v1322
          %v1340 = vadd.s32 %v1326, %v1323
          %v1341 = vadd.s32 %v1326, %v1324
          %v1342 = vadd.s32 %v1326, %v1325
          %s1343 = smul.u32 %s25, 128
          %v1344 = vlaneseq
          %v1345 = vand.u32 %v1344, 127
          %v1346 = vstv %s1343
          %v1347 = vadd.s32 %v1346, %v1345
          %vm1348 = vcmp.gt.s32.totalorder %v1347, %v1327
          %vm1349 = vcmp.gt.s32.totalorder %v1347, %v1328
          %vm1350 = vcmp.gt.s32.totalorder %v1347, %v1329
          %vm1351 = vcmp.gt.s32.totalorder %v1347, %v1330
          %vm1352 = vcmp.gt.s32.totalorder %v1347, %v1331
          %vm1353 = vcmp.gt.s32.totalorder %v1347, %v1332
          %vm1354 = vcmp.gt.s32.totalorder %v1347, %v1333
          %vm1355 = vcmp.gt.s32.totalorder %v1347, %v1334
          %vm1356 = vcmp.gt.s32.totalorder %v1347, %v1335
          %vm1357 = vcmp.gt.s32.totalorder %v1347, %v1336
          %vm1358 = vcmp.gt.s32.totalorder %v1347, %v1337
          %vm1359 = vcmp.gt.s32.totalorder %v1347, %v1338
          %vm1360 = vcmp.gt.s32.totalorder %v1347, %v1339
          %vm1361 = vcmp.gt.s32.totalorder %v1347, %v1340
          %vm1362 = vcmp.gt.s32.totalorder %v1347, %v1341
          %vm1363 = vcmp.gt.s32.totalorder %v1347, %v1342
          %vm1364 = vcmp.gt.f32.partialorder %v1292, 0.0
          %vm1365 = vcmp.gt.f32.partialorder %v1293, 0.0
          %vm1366 = vcmp.gt.f32.partialorder %v1294, 0.0
          %vm1367 = vcmp.gt.f32.partialorder %v1295, 0.0
          %vm1368 = vcmp.gt.f32.partialorder %v1296, 0.0
          %vm1369 = vcmp.gt.f32.partialorder %v1297, 0.0
          %vm1370 = vcmp.gt.f32.partialorder %v1298, 0.0
          %vm1371 = vcmp.gt.f32.partialorder %v1299, 0.0
          %vm1372 = vcmp.gt.f32.partialorder %v1300, 0.0
          %vm1373 = vcmp.gt.f32.partialorder %v1301, 0.0
          %vm1374 = vcmp.gt.f32.partialorder %v1302, 0.0
          %vm1375 = vcmp.gt.f32.partialorder %v1303, 0.0
          %vm1376 = vcmp.gt.f32.partialorder %v1304, 0.0
          %vm1377 = vcmp.gt.f32.partialorder %v1305, 0.0
          %vm1378 = vcmp.gt.f32.partialorder %v1306, 0.0
          %vm1379 = vcmp.gt.f32.partialorder %v1307, 0.0
          %vm1380 = vmand %vm1348, %vm1364
          %vm1381 = vmand %vm1349, %vm1365
          %vm1382 = vmand %vm1350, %vm1366
          %vm1383 = vmand %vm1351, %vm1367
          %vm1384 = vmand %vm1352, %vm1368
          %vm1385 = vmand %vm1353, %vm1369
          %vm1386 = vmand %vm1354, %vm1370
          %vm1387 = vmand %vm1355, %vm1371
          %vm1388 = vmand %vm1356, %vm1372
          %vm1389 = vmand %vm1357, %vm1373
          %vm1390 = vmand %vm1358, %vm1374
          %vm1391 = vmand %vm1359, %vm1375
          %vm1392 = vmand %vm1360, %vm1376
          %vm1393 = vmand %vm1361, %vm1377
          %vm1394 = vmand %vm1362, %vm1378
          %vm1395 = vmand %vm1363, %vm1379
          %vm1396 = vcmp.le.f32.partialorder %v1292, 18.659843
          %vm1397 = vcmp.le.f32.partialorder %v1293, 18.659843
          %vm1398 = vcmp.le.f32.partialorder %v1294, 18.659843
          %vm1399 = vcmp.le.f32.partialorder %v1295, 18.659843
          %vm1400 = vcmp.le.f32.partialorder %v1296, 18.659843
          %vm1401 = vcmp.le.f32.partialorder %v1297, 18.659843
          %vm1402 = vcmp.le.f32.partialorder %v1298, 18.659843
          %vm1403 = vcmp.le.f32.partialorder %v1299, 18.659843
          %vm1404 = vcmp.le.f32.partialorder %v1300, 18.659843
          %vm1405 = vcmp.le.f32.partialorder %v1301, 18.659843
          %vm1406 = vcmp.le.f32.partialorder %v1302, 18.659843
          %vm1407 = vcmp.le.f32.partialorder %v1303, 18.659843
          %vm1408 = vcmp.le.f32.partialorder %v1304, 18.659843
          %vm1409 = vcmp.le.f32.partialorder %v1305, 18.659843
          %vm1410 = vcmp.le.f32.partialorder %v1306, 18.659843
          %vm1411 = vcmp.le.f32.partialorder %v1307, 18.659843
          %vm1412 = vmand %vm1380, %vm1396
          %vm1413 = vmand %vm1381, %vm1397
          %vm1414 = vmand %vm1382, %vm1398
          %vm1415 = vmand %vm1383, %vm1399
          %vm1416 = vmand %vm1384, %vm1400
          %vm1417 = vmand %vm1385, %vm1401
          %vm1418 = vmand %vm1386, %vm1402
          %vm1419 = vmand %vm1387, %vm1403
          %vm1420 = vmand %vm1388, %vm1404
          %vm1421 = vmand %vm1389, %vm1405
          %vm1422 = vmand %vm1390, %vm1406
          %vm1423 = vmand %vm1391, %vm1407
          %vm1424 = vmand %vm1392, %vm1408
          %vm1425 = vmand %vm1393, %vm1409
          %vm1426 = vmand %vm1394, %vm1410
          %vm1427 = vmand %vm1395, %vm1411
          %vm1428 = vcmp.lt.s32.totalorder %v1327, 16
          %vm1429 = vcmp.lt.s32.totalorder %v1328, 16
          %vm1430 = vcmp.lt.s32.totalorder %v1329, 16
          %vm1431 = vcmp.lt.s32.totalorder %v1330, 16
          %vm1432 = vcmp.lt.s32.totalorder %v1331, 16
          %vm1433 = vcmp.lt.s32.totalorder %v1332, 16
          %vm1434 = vcmp.lt.s32.totalorder %v1333, 16
          %vm1435 = vcmp.lt.s32.totalorder %v1334, 16
          %vm1436 = vcmp.lt.s32.totalorder %v1335, 16
          %vm1437 = vcmp.lt.s32.totalorder %v1336, 16
          %vm1438 = vcmp.lt.s32.totalorder %v1337, 16
          %vm1439 = vcmp.lt.s32.totalorder %v1338, 16
          %vm1440 = vcmp.lt.s32.totalorder %v1339, 16
          %vm1441 = vcmp.lt.s32.totalorder %v1340, 16
          %vm1442 = vcmp.lt.s32.totalorder %v1341, 16
          %vm1443 = vcmp.lt.s32.totalorder %v1342, 16
          %vm1444 = vmand %vm1412, %vm1428
          %vm1445 = vmand %vm1413, %vm1429
          %vm1446 = vmand %vm1414, %vm1430
          %vm1447 = vmand %vm1415, %vm1431
          %vm1448 = vmand %vm1416, %vm1432
          %vm1449 = vmand %vm1417, %vm1433
          %vm1450 = vmand %vm1418, %vm1434
          %vm1451 = vmand %vm1419, %vm1435
          %vm1452 = vmand %vm1420, %vm1436
          %vm1453 = vmand %vm1421, %vm1437
          %vm1454 = vmand %vm1422, %vm1438
          %vm1455 = vmand %vm1423, %vm1439
          %vm1456 = vmand %vm1424, %vm1440
          %vm1457 = vmand %vm1425, %vm1441
          %vm1458 = vmand %vm1426, %vm1442
          %vm1459 = vmand %vm1427, %vm1443
          %vm1460 = vcmp.lt.s32.totalorder %v1347, 16
          %vm1461 = vmand %vm1444, %vm1460
          %vm1462 = vmand %vm1445, %vm1460
          %vm1463 = vmand %vm1446, %vm1460
          %vm1464 = vmand %vm1447, %vm1460
          %vm1465 = vmand %vm1448, %vm1460
          %vm1466 = vmand %vm1449, %vm1460
          %vm1467 = vmand %vm1450, %vm1460
          %vm1468 = vmand %vm1451, %vm1460
          %vm1469 = vmand %vm1452, %vm1460
          %vm1470 = vmand %vm1453, %vm1460
          %vm1471 = vmand %vm1454, %vm1460
          %vm1472 = vmand %vm1455, %vm1460
          %vm1473 = vmand %vm1456, %vm1460
          %vm1474 = vmand %vm1457, %vm1460
          %vm1475 = vmand %vm1458, %vm1460
          %vm1476 = vmand %vm1459, %vm1460
          %vm1477 = vmpackc.low %vm1462, %vm1461
          %vm1478 = vmpackc.low %vm1464, %vm1463
          %vm1479 = vmpackc.even %vm1478, %vm1477
          %vm1480 = vmpackc.low %vm1466, %vm1465
          %vm1481 = vmpackc.low %vm1468, %vm1467
          %vm1482 = vmpackc.even %vm1481, %vm1480
          %vm1483 = vmpackc.low %vm1470, %vm1469
          %vm1484 = vmpackc.low %vm1472, %vm1471
          %vm1485 = vmpackc.even %vm1484, %vm1483
          %vm1486 = vmpackc.low %vm1474, %vm1473
          %vm1487 = vmpackc.low %vm1476, %vm1475
          %vm1488 = vmpackc.even %vm1487, %vm1486
          %v1489 = vsel %vm1479, 16843009, 0
          %v1490 = vsel %vm1482, 16843009, 0
          %v1491 = vsel %vm1485, 16843009, 0
          %v1492 = vsel %vm1488, 16843009, 0
          %1493 = vst [vmem:[%s295] sm:$0xff] %v1489
          %1494 = vst [vmem:[%s295 + $0x8] sm:$0xff] %v1490
          %1495 = vst [vmem:[%s295 + $0x10] sm:$0xff] %v1491
          %1496 = vst [vmem:[%s295 + $0x18] sm:$0xff] %v1492
        $region48: #{tpu_custom_call.1} parent=35 // pred_fallthru
          _
        %s1497 = sand.u32 %s161, 1
        %s1498 = scalar_lea.sflag [#allocation3], %s1497
        %s1499 = sand.u32 %s161, 1
        %s1500 = smul.addr %s1499, 32
        %s1501 = scalar_lea.vmem [#allocation2], %s1500
        // Predicated region
        $region49: #{tpu_custom_call.1} parent=35 // pred_check
          %p1502 = pneg %p171
        $region50: #{tpu_custom_call.1} parent=35 // pred_check_branch
          %1504 = sbr.rel (%p1502) target = $region52
        $region51: #{tpu_custom_call.1} parent=35 // pred_region
          %s1505 = smul.u32 4, %s24
          %s1507 = ssub.s32 512, 512
          %1508 = vsyncadd %s1498, %s1507
          %s1509 = sadd.s32 %s25, %s1505
          %s1510 = smul.addr %s23, 4
          %s1511 = sadd.s32 %s1509, %s1510
          %s1512 = smul.addr %s1511, 128
          %s1513 = scalar_lea.hbm %s4, %s1512
          %s1514 = sshll.u32 %s1501, 4
          %s1515 = int_to_ptr.vmem [resolvable:$true] %s1514
          %1520 = dma.vmem_to_hbm [thread:$0]  %s1515, 512, %s1513, %s1498, 128, 128, 8
        $region52: #{tpu_custom_call.1} parent=35 // pred_fallthru
          _
      $region36: #{tpu_custom_call.1} parent=5 // pred_fallthru
        _
      %p1521 = scmp.le.s32.totalorder 2, %s13
      // Predicated region
      $region53: #{tpu_custom_call.1} parent=5 // pred_check
        %p1522 = pneg %p1521
      $region54: #{tpu_custom_call.1} parent=5 // pred_check_branch
        %1524 = sbr.rel (%p1522) target = $region56
      $region55: #{tpu_custom_call.1} parent=5 // pred_region
        %s1525 = ssub.s32 %s13, 2
        // Predicated region
        $region57: #{tpu_custom_call.1} parent=55 // pred_check
          %p1526 = pneg %p177
        $region58: #{tpu_custom_call.1} parent=55 // pred_check_branch
          %1528 = sbr.rel (%p1526) target = $region60
        $region59: #{tpu_custom_call.1} parent=55 // pred_region
          %s1529 = sand.u32 %s162, 1
          %s1530 = scalar_lea.sflag [#allocation3], %s1529
          %s1531 = sand.u32 %s162, 1
          %s1532 = smul.addr %s1531, 32
          %s1533 = scalar_lea.vmem [#allocation2], %s1532
          %1534 = dma.done %s1530, 512
        $region60: #{tpu_custom_call.1} parent=55 // pred_fallthru
          _
      $region56: #{tpu_custom_call.1} parent=5 // pred_fallthru
        _
    $region6: #{tpu_custom_call.1} parent=1 // loop_footer
      %s17 = sadd.s32 1, %s13
    $region7: #{tpu_custom_call.1} parent=1 // loop_footer_branch
      %12 = sbr.rel target = $region3
    $region8: #{tpu_custom_call.1} parent=1 // loop_exit
      _
    %1535 = vsyncpa [#allocation3], 1
    %s1536 = scalar_lea.sflag [#allocation3], 1
    %1537 = vsyncpa %s1536, 1

</llo_original>
